<compile_context>
chip_gen: v7x
topology: tpu7x:2x2x1
jax: 0.10.0
libtpu: 0.0.40
codegen_flags: <defaults>
</compile_context>

<pallas_src>
import math
import functools

import jax
import jax.numpy as jnp
from jax import lax
from jax.experimental import pallas as pl
from jax.experimental.pallas import tpu as pltpu

SOFTPLUS_SHIFT = math.log(2.0)


# ----------------------------------------------------------------------------
# Fused Pallas kernel: grid axis = layer; last step also runs cal_total.
# ----------------------------------------------------------------------------
def smpnn_fused_kernel(v0_ref, v1_ref,                     # [N0,H] f32, [E,NGp] bf16
                       gj_ref, gi_ref, si_ref, sj_ref,     # one-hot gather/scatter (bf16)
                       wlin_ref, w1_ref, b1_ref, w2_ref, b2_ref, bias_ref,  # stacked per-layer
                       batch_ref,                          # [N0,1] i32 graph ids
                       ctw1_ref, ctb1_ref, ctw2_ref, ctb2_ref,  # cal_total params
                       u_ref,                              # [1,G] f32 output
                       v_state):                           # VMEM scratch [N0,H] f32 (resident)
    layer = pl.program_id(0)
    bf = jnp.bfloat16

    # Seed the resident node state with the initial features at layer 0.
    @pl.when(layer == 0)
    def _seed():
        v_state[...] = v0_ref[...]

    v_bf = v_state[...].astype(bf)

    # x = lin(v0): bf16 operands on the MXU, f32 accumulation, bf16 for the gather.
    x_bf = jnp.dot(v_bf, wlin_ref[layer],
                   preferred_element_type=jnp.float32).astype(bf)          # [N0, H]

    # w = Linear(NG,H) -> ReLU -> Linear(H,H) on edge features v1.
    h = jnp.dot(v1_ref[...], w1_ref[layer],
                preferred_element_type=jnp.float32) + b1_ref[layer]
    h = jnp.maximum(h, 0.0)
    w = jnp.dot(h.astype(bf), w2_ref[layer],
                preferred_element_type=jnp.float32) + b2_ref[layer]        # [E, H] f32

    # Gather x[j] / x[i] and scatter-sum over both edge directions as one-hot
    # matmuls on the MXU (exact row selection; f32 accumulation).
    xj = jnp.dot(gj_ref[...], x_bf, preferred_element_type=jnp.float32)    # x[j], [E, H]
    xi = jnp.dot(gi_ref[...], x_bf, preferred_element_type=jnp.float32)    # x[i], [E, H]
    msg_f = (xj * w).astype(bf)     # messages along (i <- j)
    msg_b = (xi * w).astype(bf)     # messages along flipped edges (j <- i)
    out = (jnp.dot(si_ref[...], msg_f, preferred_element_type=jnp.float32)
           + jnp.dot(sj_ref[...], msg_b, preferred_element_type=jnp.float32))  # [N0, H]

    # v0' = relu(scatter_sum + bias); stays resident for the next layer.
    v_state[...] = jnp.maximum(out + bias_ref[layer], 0.0)

    # cal_total fused into the last grid step.
    @pl.when(layer == pl.num_programs(0) - 1)
    def _cal_total():
        v = v_state[...]
        hh = jnp.dot(v.astype(bf), ctw1_ref[...],
                     preferred_element_type=jnp.float32) + ctb1_ref[...]   # [N0, H/2]
        # ShiftedSoftplus: softplus(x) - log(2).  The log argument is in (1, 2],
        # so plain log is as accurate as log1p here (kept for Mosaic-lowering safety).
        hh = jnp.maximum(hh, 0.0) + jnp.log(1.0 + jnp.exp(-jnp.abs(hh))) - SOFTPLUS_SHIFT
        # Linear(H/2, 1) as a VPU multiply + lane reduction (avoid N=1 MXU matmul).
        vv = jnp.sum(hh * ctw2_ref[...], axis=-1, keepdims=True) + ctb2_ref[...]  # [N0, 1]
        # Per-graph sum pooling: mask against graph ids + sublane reduce -> [1, G].
        n0 = v.shape[0]
        g = u_ref.shape[1]
        gids = lax.broadcasted_iota(jnp.int32, (n0, g), 1)
        mask = batch_ref[...] == gids
        u_ref[...] = jnp.sum(jnp.where(mask, vv, 0.0), axis=0, keepdims=True)


# ----------------------------------------------------------------------------
# pallas_call wrapper
# ----------------------------------------------------------------------------
def _full_spec(shape):
    nd = len(shape)
    return pl.BlockSpec(shape, lambda l, _n=nd: (0,) * _n)


def smpnn_fused_call(v0, v1p, gj, gi, si, sj,
                     wlin_s, w1_s, b1_s, w2_s, b2_s, bias_s,
                     batch_col, ct_w1, ct_b1, ct_w2_row, ct_b2, num_graphs):
    num_layers = wlin_s.shape[0]
    n0, hidden = v0.shape
    args = (v0, v1p, gj, gi, si, sj,
            wlin_s, w1_s, b1_s, w2_s, b2_s, bias_s,
            batch_col, ct_w1, ct_b1, ct_w2_row, ct_b2)
    return pl.pallas_call(
        smpnn_fused_kernel,
        out_shape=jax.ShapeDtypeStruct((1, num_graphs), jnp.float32),
        grid=(num_layers,),
        in_specs=[_full_spec(a.shape) for a in args],          # full-extent, resident
        out_specs=pl.BlockSpec((1, num_graphs), lambda l: (0, 0)),
        scratch_shapes=[pltpu.VMEM((n0, hidden), jnp.float32)],  # resident node state
        compiler_params=pltpu.CompilerParams(
            dimension_semantics=("arbitrary",),                 # layers are sequential
            vmem_limit_bytes=32 * 1024 * 1024),
    )(*args)


# ----------------------------------------------------------------------------
# Full SMPNN forward (glue + kernel)
# ----------------------------------------------------------------------------
@functools.partial(jax.jit, static_argnames=("num_graphs",))
def smpnn_forward(params, z0, z1, z2, z3, edge_index0, batch, *, num_graphs):
    bf = jnp.bfloat16
    n0 = z0.shape[0]

    # init_v: embedding + Linear(1,50) / Linear(1,H) / Linear(1,H)   (glue)
    v0 = jnp.take(params["emb"], z0, axis=0)                            # [N0, H]
    v1 = z1[:, None] * params["iv_w1"].T + params["iv_b1"][None, :]     # [E, 50]
    _v2 = z2[:, None] * params["iv_w2"].T + params["iv_b2"][None, :]    # unused downstream (as in module)
    _v3 = z3[:, None] * params["iv_w3"].T + params["iv_b3"][None, :]    # unused downstream (as in module)

    # Pad num_gaussians 50 -> 128 lanes (tile-aligned, zeros keep the math exact).
    ng = v1.shape[1]
    ng_pad = 128
    v1p = jnp.pad(v1, ((0, 0), (0, ng_pad - ng))).astype(bf)

    # Stack per-layer params; matmul weights -> bf16 (MXU native), biases stay f32.
    wlin_s = jnp.stack([lp["wlin"] for lp in params["layers"]]).astype(bf)
    w1_s = jnp.pad(jnp.stack([lp["w1"] for lp in params["layers"]]),
                   ((0, 0), (0, ng_pad - ng), (0, 0))).astype(bf)
    w2_s = jnp.stack([lp["w2"] for lp in params["layers"]]).astype(bf)
    b1_s = jnp.stack([lp["b1"] for lp in params["layers"]])
    b2_s = jnp.stack([lp["b2"] for lp in params["layers"]])
    bias_s = jnp.stack([lp["bias"] for lp in params["layers"]])

    # One-hot gather/scatter operands (layer-invariant, built once).
    i = edge_index0[0].astype(jnp.int32)
    j = edge_index0[1].astype(jnp.int32)
    node_ids = jnp.arange(n0, dtype=jnp.int32)
    gj = (j[:, None] == node_ids[None, :]).astype(bf)     # [E, N0]  gather x[j]
    gi = (i[:, None] == node_ids[None, :]).astype(bf)     # [E, N0]  gather x[i]
    si = (node_ids[:, None] == i[None, :]).astype(bf)     # [N0, E]  scatter -> i
    sj = (node_ids[:, None] == j[None, :]).astype(bf)     # [N0, E]  scatter -> j

    batch_col = batch.astype(jnp.int32)[:, None]                        # [N0, 1]

    u_row = smpnn_fused_call(v0, v1p, gj, gi, si, sj,
                             wlin_s, w1_s, b1_s, w2_s, b2_s, bias_s,
                             batch_col,
                             params["ct_w1"].astype(bf), params["ct_b1"],
                             params["ct_w2"].T,                          # [1, H//2]
                             params["ct_b2"],                            # [1, 1]
                             num_graphs)
    return u_row.reshape(num_graphs, 1)                                  # out_channels == 1


# pure-JAX reference (true gather / segment-sum, same bf16 rounding points)
def smpnn_reference(params, z0, z1, z2, z3, edge_index0, batch, num_graphs):
    bf = jnp.bfloat16
    n0 = z0.shape[0]
    v0 = jnp.take(params["emb"], z0, axis=0)
    v1 = (z1[:, None] * params["iv_w1"].T + params["iv_b1"][None, :]).astype(bf)
    i, j = edge_index0[0], edge_index0[1]
    for lp in params["layers"]:
        x_bf = jnp.dot(v0.astype(bf), lp["wlin"].astype(bf),
                       preferred_element_type=jnp.float32).astype(bf)
        h = jnp.maximum(jnp.dot(v1, lp["w1"].astype(bf),
                                preferred_element_type=jnp.float32) + lp["b1"], 0.0)
        w = jnp.dot(h.astype(bf), lp["w2"].astype(bf),
                    preferred_element_type=jnp.float32) + lp["b2"]
        msg_f = (x_bf[j].astype(jnp.float32) * w).astype(bf).astype(jnp.float32)
        msg_b = (x_bf[i].astype(jnp.float32) * w).astype(bf).astype(jnp.float32)
        out = (jax.ops.segment_sum(msg_f, i, num_segments=n0)
               + jax.ops.segment_sum(msg_b, j, num_segments=n0))
        v0 = jnp.maximum(out + lp["bias"], 0.0)
    h = jnp.dot(v0.astype(bf), params["ct_w1"].astype(bf),
                preferred_element_type=jnp.float32) + params["ct_b1"]
    h = jnp.maximum(h, 0.0) + jnp.log(1.0 + jnp.exp(-jnp.abs(h))) - SOFTPLUS_SHIFT
    v = jnp.sum(h * params["ct_w2"].T, axis=-1, keepdims=True) + params["ct_b2"]
    return jax.ops.segment_sum(v, batch, num_segments=num_graphs)


# ----------------------------------------------------------------------------
# Deterministic parameter construction
# ----------------------------------------------------------------------------
def make_params(key, hidden, num_layers, num_gaussians=50, out_channels=1):
    ks = iter(jax.random.split(key, 8 + 6 * num_layers))
    nrm = lambda k, s, sc=0.1: (sc * jax.random.normal(k, s)).astype(jnp.float32)

    params = {
        "emb":   nrm(next(ks), (100, hidden), 1.0),
        "iv_w1": nrm(next(ks), (num_gaussians, 1)),
        "iv_b1": nrm(next(ks), (num_gaussians,)),
        "iv_w2": nrm(next(ks), (hidden, 1)),
        "iv_b2": nrm(next(ks), (hidden,)),
        "iv_w3": nrm(next(ks), (hidden, 1)),
        "iv_b3": nrm(next(ks), (hidden,)),
        "layers": [],
    }
    for _ in range(num_layers):
        params["layers"].append({
            "wlin": nrm(next(ks), (hidden, hidden)),          # stored as [in, out]
            "w1":   nrm(next(ks), (num_gaussians, hidden)),   # mlp Linear(50, H)
            "b1":   nrm(next(ks), (1, hidden)),
            "w2":   nrm(next(ks), (hidden, hidden)),          # mlp Linear(H, H)
            "b2":   nrm(next(ks), (1, hidden)),
            "bias": jnp.zeros((1, hidden), jnp.float32),      # reset_parameters zeroes it
        })
    params["ct_w1"] = nrm(next(ks), (hidden, hidden // 2))
    params["ct_b1"] = jnp.zeros((1, hidden // 2), jnp.float32)
    params["ct_w2"] = nrm(next(ks), (hidden // 2, out_channels))
    params["ct_b2"] = jnp.zeros((1, out_channels), jnp.float32)
    return params


# ----------------------------------------------------------------------------
if __name__ == "__main__":
    HIDDEN = 128          # hidden_channels == num_filters (module default -> lane-dense)
    NUM_GAUSS = 50
    NUM_LAYERS = 3
    OUT_CH = 1
    N0 = 16               # total nodes over the batch
    E = 24                # edges
    NUM_GRAPHS = 2

    key = jax.random.PRNGKey(0)
    kp, kz, kz1, kz2, kz3, ke = jax.random.split(key, 6)

    params = make_params(kp, HIDDEN, NUM_LAYERS, NUM_GAUSS, OUT_CH)

    z0 = jax.random.randint(kz, (N0,), 0, 100, dtype=jnp.int32)        # atom types
    z1 = jax.random.normal(kz1, (E,), jnp.float32)                     # per-edge scalar
    z2 = jax.random.normal(kz2, (E,), jnp.float32)
    z3 = jax.random.normal(kz3, (E,), jnp.float32)
    src = jax.random.randint(ke, (E,), 0, N0, dtype=jnp.int32)
    dst = (src + 1 + jnp.arange(E, dtype=jnp.int32)) % N0              # no self-loops
    edge_index0 = jnp.stack([src, dst])                                # [2, E]
    batch = jnp.concatenate([jnp.zeros(N0 // 2, jnp.int32),
                             jnp.ones(N0 - N0 // 2, jnp.int32)])

    u = smpnn_forward(params, z0, z1, z2, z3, edge_index0, batch,
                      num_graphs=NUM_GRAPHS)
    u = jax.block_until_ready(u)

    u_ref = smpnn_reference(params, z0, z1, z2, z3, edge_index0, batch, NUM_GRAPHS)
    assert u.shape == (NUM_GRAPHS, OUT_CH)
    assert jnp.allclose(u, u_ref, rtol=1e-3, atol=1e-3), (u, u_ref)

    print("KERNEL_OK")
</pallas_src>

<mosaic_0001>
module attributes {stable_mosaic.version = 11 : i64} {
  func.func @smpnn_fused_kernel(%arg0: i32, %arg1: memref<16x128xf32, #tpu.memory_space<vmem>>, %arg2: memref<24x128xbf16, #tpu.memory_space<vmem>>, %arg3: memref<24x16xbf16, #tpu.memory_space<vmem>>, %arg4: memref<24x16xbf16, #tpu.memory_space<vmem>>, %arg5: memref<16x24xbf16, #tpu.memory_space<vmem>>, %arg6: memref<16x24xbf16, #tpu.memory_space<vmem>>, %arg7: memref<3x128x128xbf16, #tpu.memory_space<vmem>>, %arg8: memref<3x128x128xbf16, #tpu.memory_space<vmem>>, %arg9: memref<3x1x128xf32, #tpu.memory_space<vmem>>, %arg10: memref<3x128x128xbf16, #tpu.memory_space<vmem>>, %arg11: memref<3x1x128xf32, #tpu.memory_space<vmem>>, %arg12: memref<3x1x128xf32, #tpu.memory_space<vmem>>, %arg13: memref<16x1xi32, #tpu.memory_space<vmem>>, %arg14: memref<128x64xbf16, #tpu.memory_space<vmem>>, %arg15: memref<1x64xf32, #tpu.memory_space<vmem>>, %arg16: memref<1x64xf32, #tpu.memory_space<vmem>>, %arg17: memref<1x1xf32, #tpu.memory_space<vmem>>, %arg18: memref<1x2xf32, #tpu.memory_space<vmem>>, %arg19: memref<16x128xf32, #tpu.memory_space<vmem>>) attributes {dimension_semantics = [#tpu.dimension_semantics<arbitrary>], iteration_bounds = array<i64: 3>, scalar_prefetch = 0 : i64, scratch_operands = 1 : i64, tpu.core_type = #tpu.core_type<tc>, window_params = [{pipeline_mode = #tpu.pipeline_mode<synchronous>, transform_indices = @transform_0, window_bounds = array<i64: 16, 128>}, {pipeline_mode = #tpu.pipeline_mode<synchronous>, transform_indices = @transform_1, window_bounds = array<i64: 24, 128>}, {pipeline_mode = #tpu.pipeline_mode<synchronous>, transform_indices = @transform_2, window_bounds = array<i64: 24, 16>}, {pipeline_mode = #tpu.pipeline_mode<synchronous>, transform_indices = @transform_3, window_bounds = array<i64: 24, 16>}, {pipeline_mode = #tpu.pipeline_mode<synchronous>, transform_indices = @transform_4, window_bounds = array<i64: 16, 24>}, {pipeline_mode = #tpu.pipeline_mode<synchronous>, transform_indices = @transform_5, window_bounds = array<i64: 16, 24>}, {pipeline_mode = #tpu.pipeline_mode<synchronous>, transform_indices = @transform_6, window_bounds = array<i64: 3, 128, 128>}, {pipeline_mode = #tpu.pipeline_mode<synchronous>, transform_indices = @transform_7, window_bounds = array<i64: 3, 128, 128>}, {pipeline_mode = #tpu.pipeline_mode<synchronous>, transform_indices = @transform_8, window_bounds = array<i64: 3, 1, 128>}, {pipeline_mode = #tpu.pipeline_mode<synchronous>, transform_indices = @transform_9, window_bounds = array<i64: 3, 128, 128>}, {pipeline_mode = #tpu.pipeline_mode<synchronous>, transform_indices = @transform_10, window_bounds = array<i64: 3, 1, 128>}, {pipeline_mode = #tpu.pipeline_mode<synchronous>, transform_indices = @transform_11, window_bounds = array<i64: 3, 1, 128>}, {pipeline_mode = #tpu.pipeline_mode<synchronous>, transform_indices = @transform_12, window_bounds = array<i64: 16, 1>}, {pipeline_mode = #tpu.pipeline_mode<synchronous>, transform_indices = @transform_13, window_bounds = array<i64: 128, 64>}, {pipeline_mode = #tpu.pipeline_mode<synchronous>, transform_indices = @transform_14, window_bounds = array<i64: 1, 64>}, {pipeline_mode = #tpu.pipeline_mode<synchronous>, transform_indices = @transform_15, window_bounds = array<i64: 1, 64>}, {pipeline_mode = #tpu.pipeline_mode<synchronous>, transform_indices = @transform_16, window_bounds = array<i64: 1, 1>}, {pipeline_mode = #tpu.pipeline_mode<synchronous>, transform_indices = @transform_17, window_bounds = array<i64: 1, 2>}]} {
    %c0_i32 = arith.constant 0 : i32
    %0 = arith.cmpi eq, %arg0, %c0_i32 : i32
    %1 = arith.extui %0 : i1 to i32
    %c0_i32_0 = arith.constant 0 : i32
    %2 = arith.cmpi ne, %1, %c0_i32_0 : i32
    scf.if %2 {
      %c0_35 = arith.constant 0 : index
      %c0_36 = arith.constant 0 : index
      %56 = vector.load %arg1[%c0_35, %c0_36] : memref<16x128xf32, #tpu.memory_space<vmem>>, vector<16x128xf32>
      %c0_37 = arith.constant 0 : index
      %c0_38 = arith.constant 0 : index
      %57 = vector.load %arg19[%c0_37, %c0_38] : memref<16x128xf32, #tpu.memory_space<vmem>>, vector<16x128xf32>
      tpu.vector_store %arg19[%c0_37, %c0_38], %56 {strides = array<i32>} : memref<16x128xf32, #tpu.memory_space<vmem>>, vector<16x128xf32>,
    } else {
    }
    %c0 = arith.constant 0 : index
    %c0_1 = arith.constant 0 : index
    %3 = vector.load %arg19[%c0, %c0_1] : memref<16x128xf32, #tpu.memory_space<vmem>>, vector<16x128xf32>
    %4 = arith.truncf %3 : vector<16x128xf32> to vector<16x128xbf16>
    %5 = arith.index_cast %arg0 : i32 to index
    %c0_2 = arith.constant 0 : index
    %c0_3 = arith.constant 0 : index
    %6 = vector.load %arg7[%5, %c0_2, %c0_3] : memref<3x128x128xbf16, #tpu.memory_space<vmem>>, vector<1x128x128xbf16>
    %7 = vector.shape_cast %6 : vector<1x128x128xbf16> to vector<128x128xbf16>
    %cst = arith.constant dense<0.000000e+00> : vector<16x128xf32>
    %8 = tpu.matmul %4, %7, %cst {dimension_numbers = #tpu.dot_dimension_numbers<[1], [0], [0], [1], [0, 0, 1, 1], [], []>} : vector<16x128xbf16>, vector<128x128xbf16>, vector<16x128xf32> -> vector<16x128xf32>
    %9 = arith.truncf %8 : vector<16x128xf32> to vector<16x128xbf16>
    %c0_4 = arith.constant 0 : index
    %c0_5 = arith.constant 0 : index
    %10 = vector.load %arg2[%c0_4, %c0_5] : memref<24x128xbf16, #tpu.memory_space<vmem>>, vector<24x128xbf16>
    %11 = arith.index_cast %arg0 : i32 to index
    %c0_6 = arith.constant 0 : index
    %c0_7 = arith.constant 0 : index
    %12 = vector.load %arg8[%11, %c0_6, %c0_7] : memref<3x128x128xbf16, #tpu.memory_space<vmem>>, vector<1x128x128xbf16>
    %13 = vector.shape_cast %12 : vector<1x128x128xbf16> to vector<128x128xbf16>
    %cst_8 = arith.constant dense<0.000000e+00> : vector<24x128xf32>
    %14 = tpu.matmul %10, %13, %cst_8 {dimension_numbers = #tpu.dot_dimension_numbers<[1], [0], [0], [1], [0, 0, 1, 1], [], []>} : vector<24x128xbf16>, vector<128x128xbf16>, vector<24x128xf32> -> vector<24x128xf32>
    %15 = arith.index_cast %arg0 : i32 to index
    %c0_9 = arith.constant 0 : index
    %c0_10 = arith.constant 0 : index
    %16 = vector.load %arg9[%15, %c0_9, %c0_10] : memref<3x1x128xf32, #tpu.memory_space<vmem>>, vector<1x1x128xf32>
    %17 = vector.shape_cast %16 : vector<1x1x128xf32> to vector<1x128xf32>
    %18 = vector.broadcast %17 : vector<1x128xf32> to vector<24x128xf32>
    %19 = arith.addf %14, %18 : vector<24x128xf32>
    %cst_11 = arith.constant 0.000000e+00 : f32
    %20 = vector.broadcast %cst_11 : f32 to vector<24x128xf32>
    %21 = arith.maximumf %19, %20 : vector<24x128xf32>
    %22 = arith.truncf %21 : vector<24x128xf32> to vector<24x128xbf16>
    %23 = arith.index_cast %arg0 : i32 to index
    %c0_12 = arith.constant 0 : index
    %c0_13 = arith.constant 0 : index
    %24 = vector.load %arg10[%23, %c0_12, %c0_13] : memref<3x128x128xbf16, #tpu.memory_space<vmem>>, vector<1x128x128xbf16>
    %25 = vector.shape_cast %24 : vector<1x128x128xbf16> to vector<128x128xbf16>
    %cst_14 = arith.constant dense<0.000000e+00> : vector<24x128xf32>
    %26 = tpu.matmul %22, %25, %cst_14 {dimension_numbers = #tpu.dot_dimension_numbers<[1], [0], [0], [1], [0, 0, 1, 1], [], []>} : vector<24x128xbf16>, vector<128x128xbf16>, vector<24x128xf32> -> vector<24x128xf32>
    %27 = arith.index_cast %arg0 : i32 to index
    %c0_15 = arith.constant 0 : index
    %c0_16 = arith.constant 0 : index
    %28 = vector.load %arg11[%27, %c0_15, %c0_16] : memref<3x1x128xf32, #tpu.memory_space<vmem>>, vector<1x1x128xf32>
    %29 = vector.shape_cast %28 : vector<1x1x128xf32> to vector<1x128xf32>
    %30 = vector.broadcast %29 : vector<1x128xf32> to vector<24x128xf32>
    %31 = arith.addf %26, %30 : vector<24x128xf32>
    %c0_17 = arith.constant 0 : index
    %c0_18 = arith.constant 0 : index
    %32 = vector.load %arg3[%c0_17, %c0_18] : memref<24x16xbf16, #tpu.memory_space<vmem>>, vector<24x16xbf16>
    %cst_19 = arith.constant dense<0.000000e+00> : vector<24x128xf32>
    %33 = tpu.matmul %32, %9, %cst_19 {dimension_numbers = #tpu.dot_dimension_numbers<[1], [0], [0], [1], [0, 0, 1, 1], [], []>} : vector<24x16xbf16>, vector<16x128xbf16>, vector<24x128xf32> -> vector<24x128xf32>
    %c0_20 = arith.constant 0 : index
    %c0_21 = arith.constant 0 : index
    %34 = vector.load %arg4[%c0_20, %c0_21] : memref<24x16xbf16, #tpu.memory_space<vmem>>, vector<24x16xbf16>
    %cst_22 = arith.constant dense<0.000000e+00> : vector<24x128xf32>
    %35 = tpu.matmul %34, %9, %cst_22 {dimension_numbers = #tpu.dot_dimension_numbers<[1], [0], [0], [1], [0, 0, 1, 1], [], []>} : vector<24x16xbf16>, vector<16x128xbf16>, vector<24x128xf32> -> vector<24x128xf32>
    %36 = arith.mulf %33, %31 : vector<24x128xf32>
    %37 = arith.truncf %36 : vector<24x128xf32> to vector<24x128xbf16>
    %38 = arith.mulf %35, %31 : vector<24x128xf32>
    %39 = arith.truncf %38 : vector<24x128xf32> to vector<24x128xbf16>
    %c0_23 = arith.constant 0 : index
    %c0_24 = arith.constant 0 : index
    %40 = vector.load %arg5[%c0_23, %c0_24] : memref<16x24xbf16, #tpu.memory_space<vmem>>, vector<16x24xbf16>
    %cst_25 = arith.constant dense<0.000000e+00> : vector<16x128xf32>
    %41 = tpu.matmul %40, %37, %cst_25 {dimension_numbers = #tpu.dot_dimension_numbers<[1], [0], [0], [1], [0, 0, 1, 1], [], []>} : vector<16x24xbf16>, vector<24x128xbf16>, vector<16x128xf32> -> vector<16x128xf32>
    %c0_26 = arith.constant 0 : index
    %c0_27 = arith.constant 0 : index
    %42 = vector.load %arg6[%c0_26, %c0_27] : memref<16x24xbf16, #tpu.memory_space<vmem>>, vector<16x24xbf16>
    %cst_28 = arith.constant dense<0.000000e+00> : vector<16x128xf32>
    %43 = tpu.matmul %42, %39, %cst_28 {dimension_numbers = #tpu.dot_dimension_numbers<[1], [0], [0], [1], [0, 0, 1, 1], [], []>} : vector<16x24xbf16>, vector<24x128xbf16>, vector<16x128xf32> -> vector<16x128xf32>
    %44 = arith.addf %41, %43 : vector<16x128xf32>
    %45 = arith.index_cast %arg0 : i32 to index
    %c0_29 = arith.constant 0 : index
    %c0_30 = arith.constant 0 : index
    %46 = vector.load %arg12[%45, %c0_29, %c0_30] : memref<3x1x128xf32, #tpu.memory_space<vmem>>, vector<1x1x128xf32>
    %47 = vector.shape_cast %46 : vector<1x1x128xf32> to vector<1x128xf32>
    %48 = vector.broadcast %47 : vector<1x128xf32> to vector<16x128xf32>
    %49 = arith.addf %44, %48 : vector<16x128xf32>
    %cst_31 = arith.constant 0.000000e+00 : f32
    %50 = vector.broadcast %cst_31 : f32 to vector<16x128xf32>
    %51 = arith.maximumf %49, %50 : vector<16x128xf32>
    %c0_32 = arith.constant 0 : index
    %c0_33 = arith.constant 0 : index
    %52 = vector.load %arg19[%c0_32, %c0_33] : memref<16x128xf32, #tpu.memory_space<vmem>>, vector<16x128xf32>
    tpu.vector_store %arg19[%c0_32, %c0_33], %51 {strides = array<i32>} : memref<16x128xf32, #tpu.memory_space<vmem>>, vector<16x128xf32>,
    %c2_i32 = arith.constant 2 : i32
    %53 = arith.cmpi eq, %arg0, %c2_i32 : i32
    %54 = arith.extui %53 : i1 to i32
    %c0_i32_34 = arith.constant 0 : i32
    %55 = arith.cmpi ne, %54, %c0_i32_34 : i32
    scf.if %55 {
      %c0_35 = arith.constant 0 : index
      %c0_36 = arith.constant 0 : index
      %56 = vector.load %arg19[%c0_35, %c0_36] : memref<16x128xf32, #tpu.memory_space<vmem>>, vector<16x128xf32>
      %57 = arith.truncf %56 : vector<16x128xf32> to vector<16x128xbf16>
      %c0_37 = arith.constant 0 : index
      %c0_38 = arith.constant 0 : index
      %58 = vector.load %arg14[%c0_37, %c0_38] : memref<128x64xbf16, #tpu.memory_space<vmem>>, vector<128x64xbf16>
      %cst_39 = arith.constant dense<0.000000e+00> : vector<16x64xf32>
      %59 = tpu.matmul %57, %58, %cst_39 {dimension_numbers = #tpu.dot_dimension_numbers<[1], [0], [0], [1], [0, 0, 1, 1], [], []>} : vector<16x128xbf16>, vector<128x64xbf16>, vector<16x64xf32> -> vector<16x64xf32>
      %c0_40 = arith.constant 0 : index
      %c0_41 = arith.constant 0 : index
      %60 = vector.load %arg15[%c0_40, %c0_41] : memref<1x64xf32, #tpu.memory_space<vmem>>, vector<1x64xf32>
      %61 = vector.broadcast %60 : vector<1x64xf32> to vector<16x64xf32>
      %62 = arith.addf %59, %61 : vector<16x64xf32>
      %cst_42 = arith.constant 0.000000e+00 : f32
      %63 = vector.broadcast %cst_42 : f32 to vector<16x64xf32>
      %64 = arith.maximumf %62, %63 : vector<16x64xf32>
      %65 = math.absf %62 : vector<16x64xf32>
      %cst_43 = arith.constant 0.000000e+00 : f32
      %66 = vector.broadcast %cst_43 : f32 to vector<16x64xf32>
      %67 = arith.subf %66, %65 : vector<16x64xf32>
      %68 = math.exp %67 : vector<16x64xf32>
      %cst_44 = arith.constant 1.000000e+00 : f32
      %69 = vector.broadcast %cst_44 : f32 to vector<16x64xf32>
      %70 = arith.addf %69, %68 : vector<16x64xf32>
      %71 = math.log %70 : vector<16x64xf32>
      %72 = arith.addf %64, %71 : vector<16x64xf32>
      %cst_45 = arith.constant 0.693147182 : f32
      %73 = vector.broadcast %cst_45 : f32 to vector<16x64xf32>
      %74 = arith.subf %72, %73 : vector<16x64xf32>
      %c0_46 = arith.constant 0 : index
      %c0_47 = arith.constant 0 : index
      %75 = vector.load %arg16[%c0_46, %c0_47] : memref<1x64xf32, #tpu.memory_space<vmem>>, vector<1x64xf32>
      %76 = vector.broadcast %75 : vector<1x64xf32> to vector<16x64xf32>
      %77 = arith.mulf %74, %76 : vector<16x64xf32>
      %cst_48 = arith.constant dense<0.000000e+00> : vector<16xf32>
      %78 = vector.multi_reduction <add>, %77, %cst_48 [1] : vector<16x64xf32> to vector<16xf32>
      %79 = vector.shape_cast %78 : vector<16xf32> to vector<16x1xf32>
      %c0_49 = arith.constant 0 : index
      %c0_50 = arith.constant 0 : index
      %80 = vector.load %arg17[%c0_49, %c0_50] : memref<1x1xf32, #tpu.memory_space<vmem>>, vector<1x1xf32>
      %81 = vector.broadcast %80 : vector<1x1xf32> to vector<16x1xf32>
      %82 = arith.addf %79, %81 : vector<16x1xf32>
      %83 = tpu.iota {dimensions = array<i32: 1>} : vector<16x2xi32>
      %c0_51 = arith.constant 0 : index
      %c0_52 = arith.constant 0 : index
      %84 = vector.load %arg13[%c0_51, %c0_52] : memref<16x1xi32, #tpu.memory_space<vmem>>, vector<16x1xi32>
      %85 = vector.broadcast %84 : vector<16x1xi32> to vector<16x2xi32>
      %86 = arith.cmpi eq, %85, %83 : vector<16x2xi32>
      %cst_53 = arith.constant 0.000000e+00 : f32
      %87 = vector.shape_cast %82 : vector<16x1xf32> to vector<16x1xf32>
      %88 = vector.broadcast %87 : vector<16x1xf32> to vector<16x2xf32>
      %89 = vector.broadcast %cst_53 : f32 to vector<16x2xf32>
      %90 = arith.select %86, %88, %89 : vector<16x2xi1>, vector<16x2xf32>
      %cst_54 = arith.constant dense<0.000000e+00> : vector<2xf32>
      %91 = vector.multi_reduction <add>, %90, %cst_54 [0] : vector<16x2xf32> to vector<2xf32>
      %92 = vector.shape_cast %91 : vector<2xf32> to vector<1x2xf32>
      %c0_55 = arith.constant 0 : index
      %c0_56 = arith.constant 0 : index
      %93 = vector.load %arg18[%c0_55, %c0_56] : memref<1x2xf32, #tpu.memory_space<vmem>>, vector<1x2xf32>
      tpu.vector_store %arg18[%c0_55, %c0_56], %92 {strides = array<i32>} : memref<1x2xf32, #tpu.memory_space<vmem>>, vector<1x2xf32>,
    } else {
    }
    return
  }
  func.func @transform_0(%arg0: i32) -> (i32, i32) {
    %c0_i32 = arith.constant 0 : i32
    %c0_i32_0 = arith.constant 0 : i32
    %c0_i32_1 = arith.constant 0 : i32
    return %c0_i32, %c0_i32_0 : i32, i32
  }
  func.func @transform_1(%arg0: i32) -> (i32, i32) {
    %c0_i32 = arith.constant 0 : i32
    %c0_i32_0 = arith.constant 0 : i32
    %c0_i32_1 = arith.constant 0 : i32
    return %c0_i32, %c0_i32_0 : i32, i32
  }
  func.func @transform_2(%arg0: i32) -> (i32, i32) {
    %c0_i32 = arith.constant 0 : i32
    %c0_i32_0 = arith.constant 0 : i32
    %c0_i32_1 = arith.constant 0 : i32
    return %c0_i32, %c0_i32_0 : i32, i32
  }
  func.func @transform_3(%arg0: i32) -> (i32, i32) {
    %c0_i32 = arith.constant 0 : i32
    %c0_i32_0 = arith.constant 0 : i32
    %c0_i32_1 = arith.constant 0 : i32
    return %c0_i32, %c0_i32_0 : i32, i32
  }
  func.func @transform_4(%arg0: i32) -> (i32, i32) {
    %c0_i32 = arith.constant 0 : i32
    %c0_i32_0 = arith.constant 0 : i32
    %c0_i32_1 = arith.constant 0 : i32
    return %c0_i32, %c0_i32_0 : i32, i32
  }
  func.func @transform_5(%arg0: i32) -> (i32, i32) {
    %c0_i32 = arith.constant 0 : i32
    %c0_i32_0 = arith.constant 0 : i32
    %c0_i32_1 = arith.constant 0 : i32
    return %c0_i32, %c0_i32_0 : i32, i32
  }
  func.func @transform_6(%arg0: i32) -> (i32, i32, i32) {
    %c0_i32 = arith.constant 0 : i32
    %c0_i32_0 = arith.constant 0 : i32
    %c0_i32_1 = arith.constant 0 : i32
    %c0_i32_2 = arith.constant 0 : i32
    return %c0_i32, %c0_i32_0, %c0_i32_1 : i32, i32, i32
  }
  func.func @transform_7(%arg0: i32) -> (i32, i32, i32) {
    %c0_i32 = arith.constant 0 : i32
    %c0_i32_0 = arith.constant 0 : i32
    %c0_i32_1 = arith.constant 0 : i32
    %c0_i32_2 = arith.constant 0 : i32
    return %c0_i32, %c0_i32_0, %c0_i32_1 : i32, i32, i32
  }
  func.func @transform_8(%arg0: i32) -> (i32, i32, i32) {
    %c0_i32 = arith.constant 0 : i32
    %c0_i32_0 = arith.constant 0 : i32
    %c0_i32_1 = arith.constant 0 : i32
    %c0_i32_2 = arith.constant 0 : i32
    return %c0_i32, %c0_i32_0, %c0_i32_1 : i32, i32, i32
  }
  func.func @transform_9(%arg0: i32) -> (i32, i32, i32) {
    %c0_i32 = arith.constant 0 : i32
    %c0_i32_0 = arith.constant 0 : i32
    %c0_i32_1 = arith.constant 0 : i32
    %c0_i32_2 = arith.constant 0 : i32
    return %c0_i32, %c0_i32_0, %c0_i32_1 : i32, i32, i32
  }
  func.func @transform_10(%arg0: i32) -> (i32, i32, i32) {
    %c0_i32 = arith.constant 0 : i32
    %c0_i32_0 = arith.constant 0 : i32
    %c0_i32_1 = arith.constant 0 : i32
    %c0_i32_2 = arith.constant 0 : i32
    return %c0_i32, %c0_i32_0, %c0_i32_1 : i32, i32, i32
  }
  func.func @transform_11(%arg0: i32) -> (i32, i32, i32) {
    %c0_i32 = arith.constant 0 : i32
    %c0_i32_0 = arith.constant 0 : i32
    %c0_i32_1 = arith.constant 0 : i32
    %c0_i32_2 = arith.constant 0 : i32
    return %c0_i32, %c0_i32_0, %c0_i32_1 : i32, i32, i32
  }
  func.func @transform_12(%arg0: i32) -> (i32, i32) {
    %c0_i32 = arith.constant 0 : i32
    %c0_i32_0 = arith.constant 0 : i32
    %c0_i32_1 = arith.constant 0 : i32
    return %c0_i32, %c0_i32_0 : i32, i32
  }
  func.func @transform_13(%arg0: i32) -> (i32, i32) {
    %c0_i32 = arith.constant 0 : i32
    %c0_i32_0 = arith.constant 0 : i32
    %c0_i32_1 = arith.constant 0 : i32
    return %c0_i32, %c0_i32_0 : i32, i32
  }
  func.func @transform_14(%arg0: i32) -> (i32, i32) {
    %c0_i32 = arith.constant 0 : i32
    %c0_i32_0 = arith.constant 0 : i32
    %c0_i32_1 = arith.constant 0 : i32
    return %c0_i32, %c0_i32_0 : i32, i32
  }
  func.func @transform_15(%arg0: i32) -> (i32, i32) {
    %c0_i32 = arith.constant 0 : i32
    %c0_i32_0 = arith.constant 0 : i32
    %c0_i32_1 = arith.constant 0 : i32
    return %c0_i32, %c0_i32_0 : i32, i32
  }
  func.func @transform_16(%arg0: i32) -> (i32, i32) {
    %c0_i32 = arith.constant 0 : i32
    %c0_i32_0 = arith.constant 0 : i32
    %c0_i32_1 = arith.constant 0 : i32
    return %c0_i32, %c0_i32_0 : i32, i32
  }
  func.func @transform_17(%arg0: i32) -> (i32, i32) {
    %c0_i32 = arith.constant 0 : i32
    %c0_i32_0 = arith.constant 0 : i32
    %c0_i32_1 = arith.constant 0 : i32
    return %c0_i32, %c0_i32_0 : i32, i32
  }
}

</mosaic_0001>

<llo_original>
// kernel: smpnn_forward.1
$region0: #{smpnn_forward.1}
  #allocation0 [shape = 'u32[]', space=smem, size = 0x4, offset = 0x4, fixed_abs, tag = 'smem constant byte address 0x4 - core index']
  #allocation1 [shape = 'u32[144,128]{1,0:T(1,128)}', space=vmem, size = 0x12000, scoped, tag = 'internal scratch']
  #allocation2 [shape = 'f32[16,128]{1,0:T(8,128)}', space=vmem, size = 0x2000, scoped, tag = 'scratch operand']
  #allocation3 [shape = 'f32[1,1]{1,0:T(1,128)S(1)}', space=vmem, size = 0x200, scoped, tag = 'scoped memory for smpnn_forward.1']
  %s0 = inlined_call_operand.vmem [shape: f32[16,128], index: 0, kind: input, shape index: {}]
  %s1 = inlined_call_operand.vmem [shape: bf16[24,128], index: 1, kind: input, shape index: {}]
  %s2 = inlined_call_operand.vmem [shape: bf16[24,16], index: 2, kind: input, shape index: {}]
  %s3 = inlined_call_operand.vmem [shape: bf16[24,16], index: 3, kind: input, shape index: {}]
  %s4 = inlined_call_operand.vmem [shape: bf16[16,24], index: 4, kind: input, shape index: {}]
  %s5 = inlined_call_operand.vmem [shape: bf16[16,24], index: 5, kind: input, shape index: {}]
  %s6 = inlined_call_operand.vmem [shape: bf16[3,128,128], index: 6, kind: input, shape index: {}]
  %s7 = inlined_call_operand.vmem [shape: bf16[3,128,128], index: 7, kind: input, shape index: {}]
  %s8 = inlined_call_operand.vmem [shape: f32[3,1,128], index: 8, kind: input, shape index: {}]
  %s9 = inlined_call_operand.vmem [shape: bf16[3,128,128], index: 9, kind: input, shape index: {}]
  %s10 = inlined_call_operand.vmem [shape: f32[3,1,128], index: 10, kind: input, shape index: {}]
  %s11 = inlined_call_operand.vmem [shape: f32[3,1,128], index: 11, kind: input, shape index: {}]
  %s12 = inlined_call_operand.vmem [shape: s32[16,1], index: 12, kind: input, shape index: {}]
  %s13 = inlined_call_operand.vmem [shape: bf16[128,64], index: 13, kind: input, shape index: {}]
  %s14 = inlined_call_operand.vmem [shape: f32[1,64], index: 14, kind: input, shape index: {}]
  %s15 = inlined_call_operand.vmem [shape: f32[1,64], index: 15, kind: input, shape index: {}]
  %s16 = inlined_call_operand.<no memory space> [shape: f32[1,1], index: 16, kind: input, shape index: {}]
  %s17 = inlined_call_operand.hbm [shape: f32[1,2], index: 17, kind: output, shape index: {}]
  %s18 = sld [smem:[#allocation0]]
  $region109: #{smpnn_forward.1} parent=0
    _
  %s20 = ssub.s32 1, %s18
  %s21 = scalar_select 0, %s20, %s18
  %v22 = vstv %s16
  %23 = vst [vmem:[#allocation3] sm:$0x1] %v22
  $region1: #{smpnn_forward.1} parent=0
    #allocation4 [shape = 'u8[512]{0}', space=vmem, size = 0x400, scoped, tag = 'output window, operand 0, single buffered']
    #allocation5 [shape = 's32[2]{0}', space=sflag, size = 0x8, scoped, tag = 'scoped memory for smpnn_forward.1']
    %24 = vsyncpa [#allocation5], 0
    loop: start=0, step=1, limit=5
    $region2: #{smpnn_forward.1} parent=1 // loop_pre_header
      _
    $region3: #{smpnn_forward.1} parent=1 // loop_header
      %s26 = sphi 0, %s30
      %p27 = scmp.ge.s32.totalorder %s26, 5
      %s34 = sphi 0, %s34
      %s36 = sphi 0, %s34
      %s37 = sphi 0, %s36
      %s51 = sphi 0, %s37
      %s55 = sphi 0, %s55
      %s57 = sphi 0, %s55
      %s58 = sphi 0, %s57
      %s72 = sphi 0, %s58
      %s76 = sphi 0, %s76
      %s78 = sphi 0, %s76
      %s79 = sphi 0, %s78
      %s93 = sphi 0, %s79
      %s97 = sphi 0, %s97
      %s99 = sphi 0, %s97
      %s100 = sphi 0, %s99
      %s114 = sphi 0, %s100
      %s118 = sphi 0, %s118
      %s120 = sphi 0, %s118
      %s121 = sphi 0, %s120
      %s135 = sphi 0, %s121
      %s139 = sphi 0, %s139
      %s141 = sphi 0, %s139
      %s142 = sphi 0, %s141
      %s156 = sphi 0, %s142
      %s160 = sphi 0, %s160
      %s162 = sphi 0, %s160
      %s163 = sphi 0, %s162
      %s177 = sphi 0, %s163
      %s181 = sphi 0, %s181
      %s183 = sphi 0, %s181
      %s184 = sphi 0, %s183
      %s198 = sphi 0, %s184
      %s202 = sphi 0, %s202
      %s204 = sphi 0, %s202
      %s205 = sphi 0, %s204
      %s219 = sphi 0, %s205
      %s223 = sphi 0, %s223
      %s225 = sphi 0, %s223
      %s226 = sphi 0, %s225
      %s240 = sphi 0, %s226
      %s244 = sphi 0, %s244
      %s246 = sphi 0, %s244
      %s247 = sphi 0, %s246
      %s261 = sphi 0, %s247
      %s265 = sphi 0, %s265
      %s267 = sphi 0, %s265
      %s268 = sphi 0, %s267
      %s282 = sphi 0, %s268
      %s286 = sphi 0, %s286
      %s288 = sphi 0, %s286
      %s289 = sphi 0, %s288
      %s303 = sphi 0, %s289
      %s307 = sphi 0, %s307
      %s309 = sphi 0, %s307
      %s310 = sphi 0, %s309
      %s324 = sphi 0, %s310
      %s328 = sphi 0, %s328
      %s330 = sphi 0, %s328
      %s331 = sphi 0, %s330
      %s345 = sphi 0, %s331
      %s349 = sphi 0, %s349
      %s351 = sphi 0, %s349
      %s352 = sphi 0, %s351
      %s366 = sphi 0, %s352
      %s370 = sphi 0, %s370
      %s372 = sphi 0, %s370
      %s373 = sphi 0, %s372
      %s387 = sphi 0, %s373
      %s391 = sphi 0, %s391
      %s393 = sphi 0, %s391
      %s394 = sphi 0, %s393
      %s408 = sphi 0, %s394
    $region4: #{smpnn_forward.1} parent=1 // loop_header_branch
      %29 = sbr.rel (%p27) target = $region8
    $region5: #{smpnn_forward.1} parent=1 // loop_body
      %s31 = ssub.s32 %s26, 1
      %s32 = ssub.s32 %s26, 2
      %s33 = sadd.s32 %s26, 1
      %s35 = sadd.s32 %s34, 1
      %p38 = scmp.eq.s32.totalorder %s26, 2
      %p39 = scmp.ne.s32.totalorder %s34, %s36
      %p40 = scmp.eq.s32.totalorder %s26, 0
      %p41 = por %p39, %p40
      %p42 = scmp.ne.s32.totalorder %s34, %s36
      %p43 = scmp.eq.s32.totalorder %s31, 2
      %p44 = por %p42, %p43
      %p45 = scmp.ne.s32.totalorder %s36, %s37
      %p46 = scmp.eq.s32.totalorder %s31, 0
      %p47 = por %p45, %p46
      %p48 = scmp.ne.s32.totalorder %s36, %s37
      %p49 = scmp.eq.s32.totalorder %s32, 2
      %p50 = por %p48, %p49
      %p52 = scmp.ne.s32.totalorder %s37, %s51
      %p53 = scmp.eq.s32.totalorder %s32, 0
      %p54 = por %p52, %p53
      %s56 = sadd.s32 %s55, 1
      %p59 = scmp.eq.s32.totalorder %s26, 2
      %p60 = scmp.ne.s32.totalorder %s55, %s57
      %p61 = scmp.eq.s32.totalorder %s26, 0
      %p62 = por %p60, %p61
      %p63 = scmp.ne.s32.totalorder %s55, %s57
      %p64 = scmp.eq.s32.totalorder %s31, 2
      %p65 = por %p63, %p64
      %p66 = scmp.ne.s32.totalorder %s57, %s58
      %p67 = scmp.eq.s32.totalorder %s31, 0
      %p68 = por %p66, %p67
      %p69 = scmp.ne.s32.totalorder %s57, %s58
      %p70 = scmp.eq.s32.totalorder %s32, 2
      %p71 = por %p69, %p70
      %p73 = scmp.ne.s32.totalorder %s58, %s72
      %p74 = scmp.eq.s32.totalorder %s32, 0
      %p75 = por %p73, %p74
      %s77 = sadd.s32 %s76, 1
      %p80 = scmp.eq.s32.totalorder %s26, 2
      %p81 = scmp.ne.s32.totalorder %s76, %s78
      %p82 = scmp.eq.s32.totalorder %s26, 0
      %p83 = por %p81, %p82
      %p84 = scmp.ne.s32.totalorder %s76, %s78
      %p85 = scmp.eq.s32.totalorder %s31, 2
      %p86 = por %p84, %p85
      %p87 = scmp.ne.s32.totalorder %s78, %s79
      %p88 = scmp.eq.s32.totalorder %s31, 0
      %p89 = por %p87, %p88
      %p90 = scmp.ne.s32.totalorder %s78, %s79
      %p91 = scmp.eq.s32.totalorder %s32, 2
      %p92 = por %p90, %p91
      %p94 = scmp.ne.s32.totalorder %s79, %s93
      %p95 = scmp.eq.s32.totalorder %s32, 0
      %p96 = por %p94, %p95
      %s98 = sadd.s32 %s97, 1
      %p101 = scmp.eq.s32.totalorder %s26, 2
      %p102 = scmp.ne.s32.totalorder %s97, %s99
      %p103 = scmp.eq.s32.totalorder %s26, 0
      %p104 = por %p102, %p103
      %p105 = scmp.ne.s32.totalorder %s97, %s99
      %p106 = scmp.eq.s32.totalorder %s31, 2
      %p107 = por %p105, %p106
      %p108 = scmp.ne.s32.totalorder %s99, %s100
      %p109 = scmp.eq.s32.totalorder %s31, 0
      %p110 = por %p108, %p109
      %p111 = scmp.ne.s32.totalorder %s99, %s100
      %p112 = scmp.eq.s32.totalorder %s32, 2
      %p113 = por %p111, %p112
      %p115 = scmp.ne.s32.totalorder %s100, %s114
      %p116 = scmp.eq.s32.totalorder %s32, 0
      %p117 = por %p115, %p116
      %s119 = sadd.s32 %s118, 1
      %p122 = scmp.eq.s32.totalorder %s26, 2
      %p123 = scmp.ne.s32.totalorder %s118, %s120
      %p124 = scmp.eq.s32.totalorder %s26, 0
      %p125 = por %p123, %p124
      %p126 = scmp.ne.s32.totalorder %s118, %s120
      %p127 = scmp.eq.s32.totalorder %s31, 2
      %p128 = por %p126, %p127
      %p129 = scmp.ne.s32.totalorder %s120, %s121
      %p130 = scmp.eq.s32.totalorder %s31, 0
      %p131 = por %p129, %p130
      %p132 = scmp.ne.s32.totalorder %s120, %s121
      %p133 = scmp.eq.s32.totalorder %s32, 2
      %p134 = por %p132, %p133
      %p136 = scmp.ne.s32.totalorder %s121, %s135
      %p137 = scmp.eq.s32.totalorder %s32, 0
      %p138 = por %p136, %p137
      %s140 = sadd.s32 %s139, 1
      %p143 = scmp.eq.s32.totalorder %s26, 2
      %p144 = scmp.ne.s32.totalorder %s139, %s141
      %p145 = scmp.eq.s32.totalorder %s26, 0
      %p146 = por %p144, %p145
      %p147 = scmp.ne.s32.totalorder %s139, %s141
      %p148 = scmp.eq.s32.totalorder %s31, 2
      %p149 = por %p147, %p148
      %p150 = scmp.ne.s32.totalorder %s141, %s142
      %p151 = scmp.eq.s32.totalorder %s31, 0
      %p152 = por %p150, %p151
      %p153 = scmp.ne.s32.totalorder %s141, %s142
      %p154 = scmp.eq.s32.totalorder %s32, 2
      %p155 = por %p153, %p154
      %p157 = scmp.ne.s32.totalorder %s142, %s156
      %p158 = scmp.eq.s32.totalorder %s32, 0
      %p159 = por %p157, %p158
      %s161 = sadd.s32 %s160, 1
      %p164 = scmp.eq.s32.totalorder %s26, 2
      %p165 = scmp.ne.s32.totalorder %s160, %s162
      %p166 = scmp.eq.s32.totalorder %s26, 0
      %p167 = por %p165, %p166
      %p168 = scmp.ne.s32.totalorder %s160, %s162
      %p169 = scmp.eq.s32.totalorder %s31, 2
      %p170 = por %p168, %p169
      %p171 = scmp.ne.s32.totalorder %s162, %s163
      %p172 = scmp.eq.s32.totalorder %s31, 0
      %p173 = por %p171, %p172
      %p174 = scmp.ne.s32.totalorder %s162, %s163
      %p175 = scmp.eq.s32.totalorder %s32, 2
      %p176 = por %p174, %p175
      %p178 = scmp.ne.s32.totalorder %s163, %s177
      %p179 = scmp.eq.s32.totalorder %s32, 0
      %p180 = por %p178, %p179
      %s182 = sadd.s32 %s181, 1
      %p185 = scmp.eq.s32.totalorder %s26, 2
      %p186 = scmp.ne.s32.totalorder %s181, %s183
      %p187 = scmp.eq.s32.totalorder %s26, 0
      %p188 = por %p186, %p187
      %p189 = scmp.ne.s32.totalorder %s181, %s183
      %p190 = scmp.eq.s32.totalorder %s31, 2
      %p191 = por %p189, %p190
      %p192 = scmp.ne.s32.totalorder %s183, %s184
      %p193 = scmp.eq.s32.totalorder %s31, 0
      %p194 = por %p192, %p193
      %p195 = scmp.ne.s32.totalorder %s183, %s184
      %p196 = scmp.eq.s32.totalorder %s32, 2
      %p197 = por %p195, %p196
      %p199 = scmp.ne.s32.totalorder %s184, %s198
      %p200 = scmp.eq.s32.totalorder %s32, 0
      %p201 = por %p199, %p200
      %s203 = sadd.s32 %s202, 1
      %p206 = scmp.eq.s32.totalorder %s26, 2
      %p207 = scmp.ne.s32.totalorder %s202, %s204
      %p208 = scmp.eq.s32.totalorder %s26, 0
      %p209 = por %p207, %p208
      %p210 = scmp.ne.s32.totalorder %s202, %s204
      %p211 = scmp.eq.s32.totalorder %s31, 2
      %p212 = por %p210, %p211
      %p213 = scmp.ne.s32.totalorder %s204, %s205
      %p214 = scmp.eq.s32.totalorder %s31, 0
      %p215 = por %p213, %p214
      %p216 = scmp.ne.s32.totalorder %s204, %s205
      %p217 = scmp.eq.s32.totalorder %s32, 2
      %p218 = por %p216, %p217
      %p220 = scmp.ne.s32.totalorder %s205, %s219
      %p221 = scmp.eq.s32.totalorder %s32, 0
      %p222 = por %p220, %p221
      %s224 = sadd.s32 %s223, 1
      %p227 = scmp.eq.s32.totalorder %s26, 2
      %p228 = scmp.ne.s32.totalorder %s223, %s225
      %p229 = scmp.eq.s32.totalorder %s26, 0
      %p230 = por %p228, %p229
      %p231 = scmp.ne.s32.totalorder %s223, %s225
      %p232 = scmp.eq.s32.totalorder %s31, 2
      %p233 = por %p231, %p232
      %p234 = scmp.ne.s32.totalorder %s225, %s226
      %p235 = scmp.eq.s32.totalorder %s31, 0
      %p236 = por %p234, %p235
      %p237 = scmp.ne.s32.totalorder %s225, %s226
      %p238 = scmp.eq.s32.totalorder %s32, 2
      %p239 = por %p237, %p238
      %p241 = scmp.ne.s32.totalorder %s226, %s240
      %p242 = scmp.eq.s32.totalorder %s32, 0
      %p243 = por %p241, %p242
      %s245 = sadd.s32 %s244, 1
      %p248 = scmp.eq.s32.totalorder %s26, 2
      %p249 = scmp.ne.s32.totalorder %s244, %s246
      %p250 = scmp.eq.s32.totalorder %s26, 0
      %p251 = por %p249, %p250
      %p252 = scmp.ne.s32.totalorder %s244, %s246
      %p253 = scmp.eq.s32.totalorder %s31, 2
      %p254 = por %p252, %p253
      %p255 = scmp.ne.s32.totalorder %s246, %s247
      %p256 = scmp.eq.s32.totalorder %s31, 0
      %p257 = por %p255, %p256
      %p258 = scmp.ne.s32.totalorder %s246, %s247
      %p259 = scmp.eq.s32.totalorder %s32, 2
      %p260 = por %p258, %p259
      %p262 = scmp.ne.s32.totalorder %s247, %s261
      %p263 = scmp.eq.s32.totalorder %s32, 0
      %p264 = por %p262, %p263
      %s266 = sadd.s32 %s265, 1
      %p269 = scmp.eq.s32.totalorder %s26, 2
      %p270 = scmp.ne.s32.totalorder %s265, %s267
      %p271 = scmp.eq.s32.totalorder %s26, 0
      %p272 = por %p270, %p271
      %p273 = scmp.ne.s32.totalorder %s265, %s267
      %p274 = scmp.eq.s32.totalorder %s31, 2
      %p275 = por %p273, %p274
      %p276 = scmp.ne.s32.totalorder %s267, %s268
      %p277 = scmp.eq.s32.totalorder %s31, 0
      %p278 = por %p276, %p277
      %p279 = scmp.ne.s32.totalorder %s267, %s268
      %p280 = scmp.eq.s32.totalorder %s32, 2
      %p281 = por %p279, %p280
      %p283 = scmp.ne.s32.totalorder %s268, %s282
      %p284 = scmp.eq.s32.totalorder %s32, 0
      %p285 = por %p283, %p284
      %s287 = sadd.s32 %s286, 1
      %p290 = scmp.eq.s32.totalorder %s26, 2
      %p291 = scmp.ne.s32.totalorder %s286, %s288
      %p292 = scmp.eq.s32.totalorder %s26, 0
      %p293 = por %p291, %p292
      %p294 = scmp.ne.s32.totalorder %s286, %s288
      %p295 = scmp.eq.s32.totalorder %s31, 2
      %p296 = por %p294, %p295
      %p297 = scmp.ne.s32.totalorder %s288, %s289
      %p298 = scmp.eq.s32.totalorder %s31, 0
      %p299 = por %p297, %p298
      %p300 = scmp.ne.s32.totalorder %s288, %s289
      %p301 = scmp.eq.s32.totalorder %s32, 2
      %p302 = por %p300, %p301
      %p304 = scmp.ne.s32.totalorder %s289, %s303
      %p305 = scmp.eq.s32.totalorder %s32, 0
      %p306 = por %p304, %p305
      %s308 = sadd.s32 %s307, 1
      %p311 = scmp.eq.s32.totalorder %s26, 2
      %p312 = scmp.ne.s32.totalorder %s307, %s309
      %p313 = scmp.eq.s32.totalorder %s26, 0
      %p314 = por %p312, %p313
      %p315 = scmp.ne.s32.totalorder %s307, %s309
      %p316 = scmp.eq.s32.totalorder %s31, 2
      %p317 = por %p315, %p316
      %p318 = scmp.ne.s32.totalorder %s309, %s310
      %p319 = scmp.eq.s32.totalorder %s31, 0
      %p320 = por %p318, %p319
      %p321 = scmp.ne.s32.totalorder %s309, %s310
      %p322 = scmp.eq.s32.totalorder %s32, 2
      %p323 = por %p321, %p322
      %p325 = scmp.ne.s32.totalorder %s310, %s324
      %p326 = scmp.eq.s32.totalorder %s32, 0
      %p327 = por %p325, %p326
      %s329 = sadd.s32 %s328, 1
      %p332 = scmp.eq.s32.totalorder %s26, 2
      %p333 = scmp.ne.s32.totalorder %s328, %s330
      %p334 = scmp.eq.s32.totalorder %s26, 0
      %p335 = por %p333, %p334
      %p336 = scmp.ne.s32.totalorder %s328, %s330
      %p337 = scmp.eq.s32.totalorder %s31, 2
      %p338 = por %p336, %p337
      %p339 = scmp.ne.s32.totalorder %s330, %s331
      %p340 = scmp.eq.s32.totalorder %s31, 0
      %p341 = por %p339, %p340
      %p342 = scmp.ne.s32.totalorder %s330, %s331
      %p343 = scmp.eq.s32.totalorder %s32, 2
      %p344 = por %p342, %p343
      %p346 = scmp.ne.s32.totalorder %s331, %s345
      %p347 = scmp.eq.s32.totalorder %s32, 0
      %p348 = por %p346, %p347
      %s350 = sadd.s32 %s349, 1
      %p353 = scmp.eq.s32.totalorder %s26, 2
      %p354 = scmp.ne.s32.totalorder %s349, %s351
      %p355 = scmp.eq.s32.totalorder %s26, 0
      %p356 = por %p354, %p355
      %p357 = scmp.ne.s32.totalorder %s349, %s351
      %p358 = scmp.eq.s32.totalorder %s31, 2
      %p359 = por %p357, %p358
      %p360 = scmp.ne.s32.totalorder %s351, %s352
      %p361 = scmp.eq.s32.totalorder %s31, 0
      %p362 = por %p360, %p361
      %p363 = scmp.ne.s32.totalorder %s351, %s352
      %p364 = scmp.eq.s32.totalorder %s32, 2
      %p365 = por %p363, %p364
      %p367 = scmp.ne.s32.totalorder %s352, %s366
      %p368 = scmp.eq.s32.totalorder %s32, 0
      %p369 = por %p367, %p368
      %s371 = sadd.s32 %s370, 1
      %p374 = scmp.eq.s32.totalorder %s26, 2
      %p375 = scmp.ne.s32.totalorder %s370, %s372
      %p376 = scmp.eq.s32.totalorder %s26, 0
      %p377 = por %p375, %p376
      %p378 = scmp.ne.s32.totalorder %s370, %s372
      %p379 = scmp.eq.s32.totalorder %s31, 2
      %p380 = por %p378, %p379
      %p381 = scmp.ne.s32.totalorder %s372, %s373
      %p382 = scmp.eq.s32.totalorder %s31, 0
      %p383 = por %p381, %p382
      %p384 = scmp.ne.s32.totalorder %s372, %s373
      %p385 = scmp.eq.s32.totalorder %s32, 2
      %p386 = por %p384, %p385
      %p388 = scmp.ne.s32.totalorder %s373, %s387
      %p389 = scmp.eq.s32.totalorder %s32, 0
      %p390 = por %p388, %p389
      %s392 = sadd.s32 %s391, 1
      %p395 = scmp.eq.s32.totalorder %s26, 2
      %p396 = scmp.ne.s32.totalorder %s391, %s393
      %p397 = scmp.eq.s32.totalorder %s26, 0
      %p398 = por %p396, %p397
      %p399 = scmp.ne.s32.totalorder %s391, %s393
      %p400 = scmp.eq.s32.totalorder %s31, 2
      %p401 = por %p399, %p400
      %p402 = scmp.ne.s32.totalorder %s393, %s394
      %p403 = scmp.eq.s32.totalorder %s31, 0
      %p404 = por %p402, %p403
      %p405 = scmp.ne.s32.totalorder %s393, %s394
      %p406 = scmp.eq.s32.totalorder %s32, 2
      %p407 = por %p405, %p406
      %p409 = scmp.ne.s32.totalorder %s394, %s408
      %p410 = scmp.eq.s32.totalorder %s32, 0
      %p411 = por %p409, %p410
      %p412 = scmp.le.s32.totalorder 1, %s26
      %p413 = scmp.lt.s32.totalorder %s26, 4
      %p414 = pnand %p412, %p413
      %p415 = pneg %p414
      // Predicated region
      $region9: #{smpnn_forward.1} parent=5 // pred_check
        _
      $region10: #{smpnn_forward.1} parent=5 // pred_check_branch
        %417 = sbr.rel (%p414) target = $region12
      $region11: #{smpnn_forward.1} parent=5 // pred_region
        %s418 = ssub.s32 %s26, 1
        // Predicated region
        $region13: #{smpnn_forward.1} parent=11 // pred_check
          %p419 = pneg %p47
        $region14: #{smpnn_forward.1} parent=11 // pred_check_branch
          %421 = sbr.rel (%p419) target = $region16
        $region15: #{smpnn_forward.1} parent=11 // pred_region
          _
        $region16: #{smpnn_forward.1} parent=11 // pred_fallthru
          _
        // Predicated region
        $region17: #{smpnn_forward.1} parent=11 // pred_check
          %p422 = pneg %p68
        $region18: #{smpnn_forward.1} parent=11 // pred_check_branch
          %424 = sbr.rel (%p422) target = $region20
        $region19: #{smpnn_forward.1} parent=11 // pred_region
          _
        $region20: #{smpnn_forward.1} parent=11 // pred_fallthru
          _
        // Predicated region
        $region21: #{smpnn_forward.1} parent=11 // pred_check
          %p425 = pneg %p89
        $region22: #{smpnn_forward.1} parent=11 // pred_check_branch
          %427 = sbr.rel (%p425) target = $region24
        $region23: #{smpnn_forward.1} parent=11 // pred_region
          _
        $region24: #{smpnn_forward.1} parent=11 // pred_fallthru
          _
        // Predicated region
        $region25: #{smpnn_forward.1} parent=11 // pred_check
          %p428 = pneg %p110
        $region26: #{smpnn_forward.1} parent=11 // pred_check_branch
          %430 = sbr.rel (%p428) target = $region28
        $region27: #{smpnn_forward.1} parent=11 // pred_region
          _
        $region28: #{smpnn_forward.1} parent=11 // pred_fallthru
          _
        // Predicated region
        $region29: #{smpnn_forward.1} parent=11 // pred_check
          %p431 = pneg %p131
        $region30: #{smpnn_forward.1} parent=11 // pred_check_branch
          %433 = sbr.rel (%p431) target = $region32
        $region31: #{smpnn_forward.1} parent=11 // pred_region
          _
        $region32: #{smpnn_forward.1} parent=11 // pred_fallthru
          _
        // Predicated region
        $region33: #{smpnn_forward.1} parent=11 // pred_check
          %p434 = pneg %p152
        $region34: #{smpnn_forward.1} parent=11 // pred_check_branch
          %436 = sbr.rel (%p434) target = $region36
        $region35: #{smpnn_forward.1} parent=11 // pred_region
          _
        $region36: #{smpnn_forward.1} parent=11 // pred_fallthru
          _
        // Predicated region
        $region37: #{smpnn_forward.1} parent=11 // pred_check
          %p437 = pneg %p173
        $region38: #{smpnn_forward.1} parent=11 // pred_check_branch
          %439 = sbr.rel (%p437) target = $region40
        $region39: #{smpnn_forward.1} parent=11 // pred_region
          _
        $region40: #{smpnn_forward.1} parent=11 // pred_fallthru
          _
        // Predicated region
        $region41: #{smpnn_forward.1} parent=11 // pred_check
          %p440 = pneg %p194
        $region42: #{smpnn_forward.1} parent=11 // pred_check_branch
          %442 = sbr.rel (%p440) target = $region44
        $region43: #{smpnn_forward.1} parent=11 // pred_region
          _
        $region44: #{smpnn_forward.1} parent=11 // pred_fallthru
          _
        // Predicated region
        $region45: #{smpnn_forward.1} parent=11 // pred_check
          %p443 = pneg %p215
        $region46: #{smpnn_forward.1} parent=11 // pred_check_branch
          %445 = sbr.rel (%p443) target = $region48
        $region47: #{smpnn_forward.1} parent=11 // pred_region
          _
        $region48: #{smpnn_forward.1} parent=11 // pred_fallthru
          _
        // Predicated region
        $region49: #{smpnn_forward.1} parent=11 // pred_check
          %p446 = pneg %p236
        $region50: #{smpnn_forward.1} parent=11 // pred_check_branch
          %448 = sbr.rel (%p446) target = $region52
        $region51: #{smpnn_forward.1} parent=11 // pred_region
          _
        $region52: #{smpnn_forward.1} parent=11 // pred_fallthru
          _
        // Predicated region
        $region53: #{smpnn_forward.1} parent=11 // pred_check
          %p449 = pneg %p257
        $region54: #{smpnn_forward.1} parent=11 // pred_check_branch
          %451 = sbr.rel (%p449) target = $region56
        $region55: #{smpnn_forward.1} parent=11 // pred_region
          _
        $region56: #{smpnn_forward.1} parent=11 // pred_fallthru
          _
        // Predicated region
        $region57: #{smpnn_forward.1} parent=11 // pred_check
          %p452 = pneg %p278
        $region58: #{smpnn_forward.1} parent=11 // pred_check_branch
          %454 = sbr.rel (%p452) target = $region60
        $region59: #{smpnn_forward.1} parent=11 // pred_region
          _
        $region60: #{smpnn_forward.1} parent=11 // pred_fallthru
          _
        // Predicated region
        $region61: #{smpnn_forward.1} parent=11 // pred_check
          %p455 = pneg %p299
        $region62: #{smpnn_forward.1} parent=11 // pred_check_branch
          %457 = sbr.rel (%p455) target = $region64
        $region63: #{smpnn_forward.1} parent=11 // pred_region
          _
        $region64: #{smpnn_forward.1} parent=11 // pred_fallthru
          _
        // Predicated region
        $region65: #{smpnn_forward.1} parent=11 // pred_check
          %p458 = pneg %p320
        $region66: #{smpnn_forward.1} parent=11 // pred_check_branch
          %460 = sbr.rel (%p458) target = $region68
        $region67: #{smpnn_forward.1} parent=11 // pred_region
          _
        $region68: #{smpnn_forward.1} parent=11 // pred_fallthru
          _
        // Predicated region
        $region69: #{smpnn_forward.1} parent=11 // pred_check
          %p461 = pneg %p341
        $region70: #{smpnn_forward.1} parent=11 // pred_check_branch
          %463 = sbr.rel (%p461) target = $region72
        $region71: #{smpnn_forward.1} parent=11 // pred_region
          _
        $region72: #{smpnn_forward.1} parent=11 // pred_fallthru
          _
        // Predicated region
        $region73: #{smpnn_forward.1} parent=11 // pred_check
          %p464 = pneg %p362
        $region74: #{smpnn_forward.1} parent=11 // pred_check_branch
          %466 = sbr.rel (%p464) target = $region76
        $region75: #{smpnn_forward.1} parent=11 // pred_region
          _
        $region76: #{smpnn_forward.1} parent=11 // pred_fallthru
          _
        // Predicated region
        $region77: #{smpnn_forward.1} parent=11 // pred_check
          %p467 = pneg %p383
        $region78: #{smpnn_forward.1} parent=11 // pred_check_branch
          %469 = sbr.rel (%p467) target = $region80
        $region79: #{smpnn_forward.1} parent=11 // pred_region
          _
        $region80: #{smpnn_forward.1} parent=11 // pred_fallthru
          _
      $region12: #{smpnn_forward.1} parent=5 // pred_fallthru
        _
      %p470 = scmp.lt.s32.totalorder %s26, 3
      // Predicated region
      $region81: #{smpnn_forward.1} parent=5 // pred_check
        %p471 = pneg %p470
      $region82: #{smpnn_forward.1} parent=5 // pred_check_branch
        %473 = sbr.rel (%p471) target = $region84
      $region83: #{smpnn_forward.1} parent=5 // pred_region
        _
      $region84: #{smpnn_forward.1} parent=5 // pred_fallthru
        _
      %p474 = scmp.le.s32.totalorder 1, %s26
      %p475 = scmp.lt.s32.totalorder %s26, 4
      %p476 = pnand %p474, %p475
      %p477 = pneg %p476
      // Predicated region
      $region85: #{smpnn_forward.1} parent=5 // pred_check
        _
      $region86: #{smpnn_forward.1} parent=5 // pred_check_branch
        %479 = sbr.rel (%p476) target = $region88
      $region87: #{smpnn_forward.1} parent=5 // pred_region
        %s480 = ssub.s32 %s26, 1
        %p481 = pneg %p47
        %p482 = pneg %p44
        %p483 = pneg %p68
        %p484 = pneg %p65
        %p485 = pneg %p89
        %p486 = pneg %p86
        %p487 = pneg %p110
        %p488 = pneg %p107
        %p489 = pneg %p131
        %p490 = pneg %p128
        %p491 = pneg %p152
        %p492 = pneg %p149
        %p493 = pneg %p173
        %p494 = pneg %p170
        %p495 = pneg %p194
        %p496 = pneg %p191
        %p497 = pneg %p215
        %p498 = pneg %p212
        %p499 = pneg %p236
        %p500 = pneg %p233
        %p501 = pneg %p257
        %p502 = pneg %p254
        %p503 = pneg %p278
        %p504 = pneg %p275
        %p505 = pneg %p299
        %p506 = pneg %p296
        %p507 = pneg %p320
        %p508 = pneg %p317
        %p509 = pneg %p341
        %p510 = pneg %p338
        %p511 = pneg %p362
        %p512 = pneg %p359
        %p513 = pneg %p383
        %p514 = pneg %p380
        %p515 = pneg %p404
        %p516 = pneg %p401
        %p518 = scmp.eq.s32.totalorder %s31, 0
        // Predicated region
        $region89: #{smpnn_forward.1} parent=87 // pred_check
          %p519 = pneg %p518
        $region90: #{smpnn_forward.1} parent=87 // pred_check_branch
          %521 = sbr.rel (%p519) target = $region92
        $region91: #{smpnn_forward.1} parent=87 // pred_region
          %v522 = vld [vmem:[%s0] sm:$0xff]
          %v523 = vld [vmem:[%s0 + $0x8] sm:$0xff]
          %524 = vst [vmem:[#allocation2] sm:$0xff] %v522
          %525 = vst [vmem:[#allocation2 + $0x8] sm:$0xff] %v523
        $region92: #{smpnn_forward.1} parent=87 // pred_fallthru
          _
        %v526 = vld [vmem:[#allocation2] sm:$0xff]
        %v527 = vld [vmem:[#allocation2 + $0x8] sm:$0xff]
        %v528 = vpack.c.bf16 %v527, %v526
        %s529 = smul.u32 %s31, 16
        %s530 = smul.addr %s529, 4
        %s531 = scalar_lea.vmem %s6, %s530
        %v532 = vld [vmem:[%s531] sm:$0xf]
        %v533 = vld [vmem:[%s531 + $0x4] sm:$0xf]
        %v534 = vld [vmem:[%s531 + $0x8] sm:$0xf]
        %v535 = vld [vmem:[%s531 + $0xc] sm:$0xf]
        %v536 = vld [vmem:[%s531 + $0x10] sm:$0xf]
        %v537 = vld [vmem:[%s531 + $0x14] sm:$0xf]
        %v538 = vld [vmem:[%s531 + $0x18] sm:$0xf]
        %v539 = vld [vmem:[%s531 + $0x1c] sm:$0xf]
        %v540 = vld [vmem:[%s531 + $0x20] sm:$0xf]
        %v541 = vld [vmem:[%s531 + $0x24] sm:$0xf]
        %v542 = vld [vmem:[%s531 + $0x28] sm:$0xf]
        %v543 = vld [vmem:[%s531 + $0x2c] sm:$0xf]
        %v544 = vld [vmem:[%s531 + $0x30] sm:$0xf]
        %v545 = vld [vmem:[%s531 + $0x34] sm:$0xf]
        %v546 = vld [vmem:[%s531 + $0x38] sm:$0xf]
        %v547 = vld [vmem:[%s531 + $0x3c] sm:$0xf]
        %v564 = vunpack.c.l.b16 %v532
        %v565 = vunpack.c.l.b16 %v533
        %v566 = vunpack.c.l.b16 %v534
        %v567 = vunpack.c.l.b16 %v535
        %v568 = vunpack.c.l.b16 %v536
        %v569 = vunpack.c.l.b16 %v537
        %v570 = vunpack.c.l.b16 %v538
        %v571 = vunpack.c.l.b16 %v539
        %v572 = vunpack.c.l.b16 %v540
        %v573 = vunpack.c.l.b16 %v541
        %v574 = vunpack.c.l.b16 %v542
        %v575 = vunpack.c.l.b16 %v543
        %v576 = vunpack.c.l.b16 %v544
        %v577 = vunpack.c.l.b16 %v545
        %v578 = vunpack.c.l.b16 %v546
        %v579 = vunpack.c.l.b16 %v547
        %v580 = vpack.c.b16 %v565, %v564
        %v581 = vpack.c.b16 %v567, %v566
        %v582 = vpack.c.b16 %v569, %v568
        %v583 = vpack.c.b16 %v571, %v570
        %v584 = vpack.c.b16 %v573, %v572
        %v585 = vpack.c.b16 %v575, %v574
        %v586 = vpack.c.b16 %v577, %v576
        %v587 = vpack.c.b16 %v579, %v578
        %596 = vmatprep.subr.bf16.mxu0 0
        %597 = vmatpush1.bf16.msra.mxu0 %v580
        %598 = vmatprep.subr.bf16.mxu0 0
        %599 = vmatpush1.bf16.msra.mxu0 %v581
        %600 = vmatprep.subr.bf16.mxu0 0
        %601 = vmatpush1.bf16.msra.mxu0 %v582
        %602 = vmatprep.subr.bf16.mxu0 0
        %603 = vmatpush1.bf16.msra.mxu0 %v583
        %604 = vmatprep.subr.bf16.mxu0 0
        %605 = vmatpush1.bf16.msra.mxu0 %v584
        %606 = vmatprep.subr.bf16.mxu0 0
        %607 = vmatpush1.bf16.msra.mxu0 %v585
        %608 = vmatprep.subr.bf16.mxu0 0
        %609 = vmatpush1.bf16.msra.mxu0 %v586
        %610 = vmatprep.subr.bf16.mxu0 0
        %611 = vmatpush1.bf16.msra.mxu0 %v587
        %612 = vmatprep.subr.bf16.mxu0 0
        %613 = vmatpush1.bf16.msra.mxu0 0
        %614 = vmatprep.subr.bf16.mxu0 0
        %615 = vmatpush1.bf16.msra.mxu0 0
        %616 = vmatprep.subr.bf16.mxu0 0
        %617 = vmatpush1.bf16.msra.mxu0 0
        %618 = vmatprep.subr.bf16.mxu0 0
        %619 = vmatpush1.bf16.msra.mxu0 0
        %620 = vmatprep.subr.bf16.mxu0 0
        %621 = vmatpush1.bf16.msra.mxu0 0
        %622 = vmatprep.subr.bf16.mxu0 0
        %623 = vmatpush1.bf16.msra.mxu0 0
        %624 = vmatprep.subr.bf16.mxu0 0
        %625 = vmatpush1.bf16.msra.mxu0 0
        %626 = vmatprep.subr.bf16.mxu0 0
        %627 = vmatpush1.bf16.msra.mxu0 0
        %628 = vmatprep.mubr.bf16.mxu0 0
        %629 = vmatmul.mubr.bf16.gmra.mrb[0].mxu0 %v528
        %v630 = vpop.f32.mrb[0].mxu0
        %v631 = vadd.f32 0.0, %v630
        %v632 = vpop.f32.mrb[0].mxu0
        %v633 = vpop.f32.mrb[0].mxu0
        %v634 = vadd.f32 0.0, %v633
        %v635 = vpop.f32.mrb[0].mxu0
        %636 = vdwg.mxu0
        %v637 = vpack.c.bf16 %v634, %v631
        %v638 = vld [vmem:[%s1] sm:$0xf]
        %v639 = vld [vmem:[%s1 + $0x4] sm:$0xf]
        %v640 = vld [vmem:[%s1 + $0x8] sm:$0xf]
        %s641 = smul.addr %s529, 4
        %s642 = scalar_lea.vmem %s7, %s641
        %v643 = vld [vmem:[%s642] sm:$0xf]
        %v644 = vld [vmem:[%s642 + $0x4] sm:$0xf]
        %v645 = vld [vmem:[%s642 + $0x8] sm:$0xf]
        %v646 = vld [vmem:[%s642 + $0xc] sm:$0xf]
        %v647 = vld [vmem:[%s642 + $0x10] sm:$0xf]
        %v648 = vld [vmem:[%s642 + $0x14] sm:$0xf]
        %v649 = vld [vmem:[%s642 + $0x18] sm:$0xf]
        %v650 = vld [vmem:[%s642 + $0x1c] sm:$0xf]
        %v651 = vld [vmem:[%s642 + $0x20] sm:$0xf]
        %v652 = vld [vmem:[%s642 + $0x24] sm:$0xf]
        %v653 = vld [vmem:[%s642 + $0x28] sm:$0xf]
        %v654 = vld [vmem:[%s642 + $0x2c] sm:$0xf]
        %v655 = vld [vmem:[%s642 + $0x30] sm:$0xf]
        %v656 = vld [vmem:[%s642 + $0x34] sm:$0xf]
        %v657 = vld [vmem:[%s642 + $0x38] sm:$0xf]
        %v658 = vld [vmem:[%s642 + $0x3c] sm:$0xf]
        %s659 = scalar_lea.vmem %s8, %s31
        %v660 = vld [vmem:[%s659] sm:$0x1]
        %v662 = vlaneseq
        %v663 = vshrl.u32 %v662, 7
        %v664 = vsub.s32 0, %v663
        %v665 = vrot.slane %v660, %v664
        %v670 = vunpack.c.l.b16 %v638
        %v671 = vunpack.c.l.b16 %v639
        %v672 = vunpack.c.l.b16 %v640
        %v673 = vpack.c.b16 %v671, %v670
        %v674 = vpack.c.b16 %v672, %v672
        %v693 = vunpack.c.l.b16 %v643
        %v694 = vunpack.c.l.b16 %v644
        %v695 = vunpack.c.l.b16 %v645
        %v696 = vunpack.c.l.b16 %v646
        %v697 = vunpack.c.l.b16 %v647
        %v698 = vunpack.c.l.b16 %v648
        %v699 = vunpack.c.l.b16 %v649
        %v700 = vunpack.c.l.b16 %v650
        %v701 = vunpack.c.l.b16 %v651
        %v702 = vunpack.c.l.b16 %v652
        %v703 = vunpack.c.l.b16 %v653
        %v704 = vunpack.c.l.b16 %v654
        %v705 = vunpack.c.l.b16 %v655
        %v706 = vunpack.c.l.b16 %v656
        %v707 = vunpack.c.l.b16 %v657
        %v708 = vunpack.c.l.b16 %v658
        %v709 = vpack.c.b16 %v694, %v693
        %v710 = vpack.c.b16 %v696, %v695
        %v711 = vpack.c.b16 %v698, %v697
        %v712 = vpack.c.b16 %v700, %v699
        %v713 = vpack.c.b16 %v702, %v701
        %v714 = vpack.c.b16 %v704, %v703
        %v715 = vpack.c.b16 %v706, %v705
        %v716 = vpack.c.b16 %v708, %v707
        %725 = vmatprep.subr.bf16.mxu0 0
        %726 = vmatpush1.bf16.msra.mxu0 %v709
        %727 = vmatprep.subr.bf16.mxu0 0
        %728 = vmatpush1.bf16.msra.mxu0 %v710
        %729 = vmatprep.subr.bf16.mxu0 0
        %730 = vmatpush1.bf16.msra.mxu0 %v711
        %731 = vmatprep.subr.bf16.mxu0 0
        %732 = vmatpush1.bf16.msra.mxu0 %v712
        %733 = vmatprep.subr.bf16.mxu0 0
        %734 = vmatpush1.bf16.msra.mxu0 %v713
        %735 = vmatprep.subr.bf16.mxu0 0
        %736 = vmatpush1.bf16.msra.mxu0 %v714
        %737 = vmatprep.subr.bf16.mxu0 0
        %738 = vmatpush1.bf16.msra.mxu0 %v715
        %739 = vmatprep.subr.bf16.mxu0 0
        %740 = vmatpush1.bf16.msra.mxu0 %v716
        %741 = vmatprep.subr.bf16.mxu0 0
        %742 = vmatpush1.bf16.msra.mxu0 0
        %743 = vmatprep.subr.bf16.mxu0 0
        %744 = vmatpush1.bf16.msra.mxu0 0
        %745 = vmatprep.subr.bf16.mxu0 0
        %746 = vmatpush1.bf16.msra.mxu0 0
        %747 = vmatprep.subr.bf16.mxu0 0
        %748 = vmatpush1.bf16.msra.mxu0 0
        %749 = vmatprep.subr.bf16.mxu0 0
        %750 = vmatpush1.bf16.msra.mxu0 0
        %751 = vmatprep.subr.bf16.mxu0 0
        %752 = vmatpush1.bf16.msra.mxu0 0
        %753 = vmatprep.subr.bf16.mxu0 0
        %754 = vmatpush1.bf16.msra.mxu0 0
        %755 = vmatprep.subr.bf16.mxu0 0
        %756 = vmatpush1.bf16.msra.mxu0 0
        %757 = vmatprep.mubr.bf16.mxu0 0
        %758 = vmatmul.mubr.bf16.gmra.mrb[0].mxu0 %v673
        %v759 = vpop.f32.mrb[0].mxu0
        %v760 = vadd.f32 %v665, %v759
        %v761 = vpop.f32.mrb[0].mxu0
        %v762 = vpop.f32.mrb[0].mxu0
        %v763 = vadd.f32 %v665, %v762
        %v764 = vpop.f32.mrb[0].mxu0
        %765 = vmatprep.mubr.bf16.mxu0 0
        %766 = vmatmul.mubr.bf16.gmra.mrb[0].mxu0 %v674
        %v767 = vpop.f32.mrb[0].mxu0
        %v768 = vadd.f32 %v665, %v767
        %v769 = vpop.f32.mrb[0].mxu0
        %v770 = vpop.f32.mrb[0].mxu0
        %v771 = vpop.f32.mrb[0].mxu0
        %772 = vdwg.mxu0
        %v773 = vmax.f32 %v760, 0.0
        %v774 = vmax.f32 %v763, 0.0
        %v775 = vmax.f32 %v768, 0.0
        %v776 = vpack.c.bf16 %v774, %v773
        %v777 = vpack.c.bf16 %v775, %v775
        %s778 = smul.addr %s529, 4
        %s779 = scalar_lea.vmem %s9, %s778
        %v780 = vld [vmem:[%s779] sm:$0xf]
        %v781 = vld [vmem:[%s779 + $0x4] sm:$0xf]
        %v782 = vld [vmem:[%s779 + $0x8] sm:$0xf]
        %v783 = vld [vmem:[%s779 + $0xc] sm:$0xf]
        %v784 = vld [vmem:[%s779 + $0x10] sm:$0xf]
        %v785 = vld [vmem:[%s779 + $0x14] sm:$0xf]
        %v786 = vld [vmem:[%s779 + $0x18] sm:$0xf]
        %v787 = vld [vmem:[%s779 + $0x1c] sm:$0xf]
        %v788 = vld [vmem:[%s779 + $0x20] sm:$0xf]
        %v789 = vld [vmem:[%s779 + $0x24] sm:$0xf]
        %v790 = vld [vmem:[%s779 + $0x28] sm:$0xf]
        %v791 = vld [vmem:[%s779 + $0x2c] sm:$0xf]
        %v792 = vld [vmem:[%s779 + $0x30] sm:$0xf]
        %v793 = vld [vmem:[%s779 + $0x34] sm:$0xf]
        %v794 = vld [vmem:[%s779 + $0x38] sm:$0xf]
        %v795 = vld [vmem:[%s779 + $0x3c] sm:$0xf]
        %s796 = scalar_lea.vmem %s10, %s31
        %v797 = vld [vmem:[%s796] sm:$0x1]
        %v799 = vlaneseq
        %v800 = vshrl.u32 %v799, 7
        %v801 = vsub.s32 0, %v800
        %v802 = vrot.slane %v797, %v801
        %v820 = vunpack.c.l.b16 %v780
        %v821 = vunpack.c.l.b16 %v781
        %v822 = vunpack.c.l.b16 %v782
        %v823 = vunpack.c.l.b16 %v783
        %v824 = vunpack.c.l.b16 %v784
        %v825 = vunpack.c.l.b16 %v785
        %v826 = vunpack.c.l.b16 %v786
        %v827 = vunpack.c.l.b16 %v787
        %v828 = vunpack.c.l.b16 %v788
        %v829 = vunpack.c.l.b16 %v789
        %v830 = vunpack.c.l.b16 %v790
        %v831 = vunpack.c.l.b16 %v791
        %v832 = vunpack.c.l.b16 %v792
        %v833 = vunpack.c.l.b16 %v793
        %v834 = vunpack.c.l.b16 %v794
        %v835 = vunpack.c.l.b16 %v795
        %v836 = vpack.c.b16 %v821, %v820
        %v837 = vpack.c.b16 %v823, %v822
        %v838 = vpack.c.b16 %v825, %v824
        %v839 = vpack.c.b16 %v827, %v826
        %v840 = vpack.c.b16 %v829, %v828
        %v841 = vpack.c.b16 %v831, %v830
        %v842 = vpack.c.b16 %v833, %v832
        %v843 = vpack.c.b16 %v835, %v834
        %852 = vmatprep.subr.bf16.mxu0 0
        %853 = vmatpush1.bf16.msra.mxu0 %v836
        %854 = vmatprep.subr.bf16.mxu0 0
        %855 = vmatpush1.bf16.msra.mxu0 %v837
        %856 = vmatprep.subr.bf16.mxu0 0
        %857 = vmatpush1.bf16.msra.mxu0 %v838
        %858 = vmatprep.subr.bf16.mxu0 0
        %859 = vmatpush1.bf16.msra.mxu0 %v839
        %860 = vmatprep.subr.bf16.mxu0 0
        %861 = vmatpush1.bf16.msra.mxu0 %v840
        %862 = vmatprep.subr.bf16.mxu0 0
        %863 = vmatpush1.bf16.msra.mxu0 %v841
        %864 = vmatprep.subr.bf16.mxu0 0
        %865 = vmatpush1.bf16.msra.mxu0 %v842
        %866 = vmatprep.subr.bf16.mxu0 0
        %867 = vmatpush1.bf16.msra.mxu0 %v843
        %868 = vmatprep.subr.bf16.mxu0 0
        %869 = vmatpush1.bf16.msra.mxu0 0
        %870 = vmatprep.subr.bf16.mxu0 0
        %871 = vmatpush1.bf16.msra.mxu0 0
        %872 = vmatprep.subr.bf16.mxu0 0
        %873 = vmatpush1.bf16.msra.mxu0 0
        %874 = vmatprep.subr.bf16.mxu0 0
        %875 = vmatpush1.bf16.msra.mxu0 0
        %876 = vmatprep.subr.bf16.mxu0 0
        %877 = vmatpush1.bf16.msra.mxu0 0
        %878 = vmatprep.subr.bf16.mxu0 0
        %879 = vmatpush1.bf16.msra.mxu0 0
        %880 = vmatprep.subr.bf16.mxu0 0
        %881 = vmatpush1.bf16.msra.mxu0 0
        %882 = vmatprep.subr.bf16.mxu0 0
        %883 = vmatpush1.bf16.msra.mxu0 0
        %884 = vmatprep.mubr.bf16.mxu0 0
        %885 = vmatmul.mubr.bf16.gmra.mrb[0].mxu0 %v776
        %v886 = vpop.f32.mrb[0].mxu0
        %v887 = vadd.f32 %v802, %v886
        %v888 = vpop.f32.mrb[0].mxu0
        %v889 = vpop.f32.mrb[0].mxu0
        %v890 = vadd.f32 %v802, %v889
        %v891 = vpop.f32.mrb[0].mxu0
        %892 = vmatprep.mubr.bf16.mxu0 0
        %893 = vmatmul.mubr.bf16.gmra.mrb[0].mxu0 %v777
        %v894 = vpop.f32.mrb[0].mxu0
        %v895 = vadd.f32 %v802, %v894
        %v896 = vpop.f32.mrb[0].mxu0
        %v897 = vpop.f32.mrb[0].mxu0
        %v898 = vpop.f32.mrb[0].mxu0
        %899 = vdwg.mxu0
        %v900 = vld [vmem:[%s2] sm:$0xf]
        %v901 = vld [vmem:[%s2 + $0x4] sm:$0xf]
        %v902 = vld [vmem:[%s2 + $0x8] sm:$0xf]
        %v906 = vunpack.c.l.b16 %v900
        %v907 = vunpack.c.l.b16 %v901
        %v908 = vunpack.c.l.b16 %v902
        %v909 = vpack.c.b16 %v907, %v906
        %v910 = vpack.c.b16 %v908, %v908
        %vm911 = vcmask 130048
        %v913 = vsel %vm911, %v909, 0
        %v916 = vsel %vm911, %v910, 0
        %918 = vmatprep.subr.bf16.mxu0 0
        %919 = vmatpush1.bf16.msra.mxu0 %v637
        %920 = vmatprep.subr.bf16.mxu0 0
        %921 = vmatpush1.bf16.msra.mxu0 0
        %922 = vmatprep.subr.bf16.mxu0 0
        %923 = vmatpush1.bf16.msra.mxu0 0
        %924 = vmatprep.subr.bf16.mxu0 0
        %925 = vmatpush1.bf16.msra.mxu0 0
        %926 = vmatprep.subr.bf16.mxu0 0
        %927 = vmatpush1.bf16.msra.mxu0 0
        %928 = vmatprep.subr.bf16.mxu0 0
        %929 = vmatpush1.bf16.msra.mxu0 0
        %930 = vmatprep.subr.bf16.mxu0 0
        %931 = vmatpush1.bf16.msra.mxu0 0
        %932 = vmatprep.subr.bf16.mxu0 0
        %933 = vmatpush1.bf16.msra.mxu0 0
        %934 = vmatprep.subr.bf16.mxu0 0
        %935 = vmatpush1.bf16.msra.mxu0 0
        %936 = vmatprep.subr.bf16.mxu0 0
        %937 = vmatpush1.bf16.msra.mxu0 0
        %938 = vmatprep.subr.bf16.mxu0 0
        %939 = vmatpush1.bf16.msra.mxu0 0
        %940 = vmatprep.subr.bf16.mxu0 0
        %941 = vmatpush1.bf16.msra.mxu0 0
        %942 = vmatprep.subr.bf16.mxu0 0
        %943 = vmatpush1.bf16.msra.mxu0 0
        %944 = vmatprep.subr.bf16.mxu0 0
        %945 = vmatpush1.bf16.msra.mxu0 0
        %946 = vmatprep.subr.bf16.mxu0 0
        %947 = vmatpush1.bf16.msra.mxu0 0
        %948 = vmatprep.subr.bf16.mxu0 0
        %949 = vmatpush1.bf16.msra.mxu0 0
        %950 = vmatprep.mubr.bf16.mxu0 0
        %951 = vmatmul.mubr.bf16.gmra.mrb[0].mxu0 %v913
        %v952 = vpop.f32.mrb[0].mxu0
        %v953 = vadd.f32 0.0, %v952
        %v954 = vpop.f32.mrb[0].mxu0
        %v955 = vpop.f32.mrb[0].mxu0
        %v956 = vadd.f32 0.0, %v955
        %v957 = vpop.f32.mrb[0].mxu0
        %958 = vmatprep.mubr.bf16.mxu0 0
        %959 = vmatmul.mubr.bf16.gmra.mrb[0].mxu0 %v916
        %v960 = vpop.f32.mrb[0].mxu0
        %v961 = vadd.f32 0.0, %v960
        %v962 = vpop.f32.mrb[0].mxu0
        %v963 = vpop.f32.mrb[0].mxu0
        %v964 = vpop.f32.mrb[0].mxu0
        %965 = vdwg.mxu0
        %v966 = vld [vmem:[%s3] sm:$0xf]
        %v967 = vld [vmem:[%s3 + $0x4] sm:$0xf]
        %v968 = vld [vmem:[%s3 + $0x8] sm:$0xf]
        %v972 = vunpack.c.l.b16 %v966
        %v973 = vunpack.c.l.b16 %v967
        %v974 = vunpack.c.l.b16 %v968
        %v975 = vpack.c.b16 %v973, %v972
        %v976 = vpack.c.b16 %v974, %v974
        %v978 = vsel %vm911, %v975, 0
        %v981 = vsel %vm911, %v976, 0
        %983 = vmatprep.subr.bf16.mxu0 0
        %984 = vmatpush1.bf16.msra.mxu0 %v637
        %985 = vmatprep.subr.bf16.mxu0 0
        %986 = vmatpush1.bf16.msra.mxu0 0
        %987 = vmatprep.subr.bf16.mxu0 0
        %988 = vmatpush1.bf16.msra.mxu0 0
        %989 = vmatprep.subr.bf16.mxu0 0
        %990 = vmatpush1.bf16.msra.mxu0 0
        %991 = vmatprep.subr.bf16.mxu0 0
        %992 = vmatpush1.bf16.msra.mxu0 0
        %993 = vmatprep.subr.bf16.mxu0 0
        %994 = vmatpush1.bf16.msra.mxu0 0
        %995 = vmatprep.subr.bf16.mxu0 0
        %996 = vmatpush1.bf16.msra.mxu0 0
        %997 = vmatprep.subr.bf16.mxu0 0
        %998 = vmatpush1.bf16.msra.mxu0 0
        %999 = vmatprep.subr.bf16.mxu0 0
        %1000 = vmatpush1.bf16.msra.mxu0 0
        %1001 = vmatprep.subr.bf16.mxu0 0
        %1002 = vmatpush1.bf16.msra.mxu0 0
        %1003 = vmatprep.subr.bf16.mxu0 0
        %1004 = vmatpush1.bf16.msra.mxu0 0
        %1005 = vmatprep.subr.bf16.mxu0 0
        %1006 = vmatpush1.bf16.msra.mxu0 0
        %1007 = vmatprep.subr.bf16.mxu0 0
        %1008 = vmatpush1.bf16.msra.mxu0 0
        %1009 = vmatprep.subr.bf16.mxu0 0
        %1010 = vmatpush1.bf16.msra.mxu0 0
        %1011 = vmatprep.subr.bf16.mxu0 0
        %1012 = vmatpush1.bf16.msra.mxu0 0
        %1013 = vmatprep.subr.bf16.mxu0 0
        %1014 = vmatpush1.bf16.msra.mxu0 0
        %1015 = vmatprep.mubr.bf16.mxu0 0
        %1016 = vmatmul.mubr.bf16.gmra.mrb[0].mxu0 %v978
        %v1017 = vpop.f32.mrb[0].mxu0
        %v1018 = vadd.f32 0.0, %v1017
        %v1019 = vpop.f32.mrb[0].mxu0
        %v1020 = vpop.f32.mrb[0].mxu0
        %v1021 = vadd.f32 0.0, %v1020
        %v1022 = vpop.f32.mrb[0].mxu0
        %1023 = vmatprep.mubr.bf16.mxu0 0
        %1024 = vmatmul.mubr.bf16.gmra.mrb[0].mxu0 %v981
        %v1025 = vpop.f32.mrb[0].mxu0
        %v1026 = vadd.f32 0.0, %v1025
        %v1027 = vpop.f32.mrb[0].mxu0
        %v1028 = vpop.f32.mrb[0].mxu0
        %v1029 = vpop.f32.mrb[0].mxu0
        %1030 = vdwg.mxu0
        %v1031 = vmul.f32 %v953, %v887
        %v1032 = vmul.f32 %v956, %v890
        %v1033 = vmul.f32 %v961, %v895
        %v1034 = vpack.c.bf16 %v1032, %v1031
        %v1035 = vpack.c.bf16 %v1033, %v1033
        %v1036 = vmul.f32 %v1018, %v887
        %v1037 = vmul.f32 %v1021, %v890
        %v1038 = vmul.f32 %v1026, %v895
        %v1039 = vpack.c.bf16 %v1037, %v1036
        %v1040 = vpack.c.bf16 %v1038, %v1038
        %v1041 = vld [vmem:[%s4] sm:$0xf]
        %v1042 = vld [vmem:[%s4 + $0x4] sm:$0xf]
        %v1043 = vld [vmem:[%s5] sm:$0xf]
        %v1044 = vld [vmem:[%s5 + $0x4] sm:$0xf]
        %v1047 = vunpack.c.l.b16 %v1043
        %v1048 = vunpack.c.l.b16 %v1044
        %v1049 = vpack.c.b16 %v1048, %v1047
        %vm1050 = vcmask 195584
        %v1052 = vsel %vm1050, %v1049, 0
        %vm1054 = vcmask 1043456
        %v1056 = vsel %vm1054, %v1040, 0
        %1058 = vmatprep.subr.bf16.mxu0 0
        %1059 = vmatpush1.bf16.msra.mxu0 %v1039
        %1060 = vmatprep.subr.bf16.mxu0 0
        %1061 = vmatpush1.bf16.msra.mxu0 %v1056
        %1062 = vmatprep.subr.bf16.mxu0 0
        %1063 = vmatpush1.bf16.msra.mxu0 0
        %1064 = vmatprep.subr.bf16.mxu0 0
        %1065 = vmatpush1.bf16.msra.mxu0 0
        %1066 = vmatprep.subr.bf16.mxu0 0
        %1067 = vmatpush1.bf16.msra.mxu0 0
        %1068 = vmatprep.subr.bf16.mxu0 0
        %1069 = vmatpush1.bf16.msra.mxu0 0
        %1070 = vmatprep.subr.bf16.mxu0 0
        %1071 = vmatpush1.bf16.msra.mxu0 0
        %1072 = vmatprep.subr.bf16.mxu0 0
        %1073 = vmatpush1.bf16.msra.mxu0 0
        %1074 = vmatprep.subr.bf16.mxu0 0
        %1075 = vmatpush1.bf16.msra.mxu0 0
        %1076 = vmatprep.subr.bf16.mxu0 0
        %1077 = vmatpush1.bf16.msra.mxu0 0
        %1078 = vmatprep.subr.bf16.mxu0 0
        %1079 = vmatpush1.bf16.msra.mxu0 0
        %1080 = vmatprep.subr.bf16.mxu0 0
        %1081 = vmatpush1.bf16.msra.mxu0 0
        %1082 = vmatprep.subr.bf16.mxu0 0
        %1083 = vmatpush1.bf16.msra.mxu0 0
        %1084 = vmatprep.subr.bf16.mxu0 0
        %1085 = vmatpush1.bf16.msra.mxu0 0
        %1086 = vmatprep.subr.bf16.mxu0 0
        %1087 = vmatpush1.bf16.msra.mxu0 0
        %1088 = vmatprep.subr.bf16.mxu0 0
        %1089 = vmatpush1.bf16.msra.mxu0 0
        %1090 = vmatprep.mubr.bf16.mxu0 0
        %1091 = vmatmul.mubr.bf16.gmra.mrb[0].mxu0 %v1052
        %v1092 = vpop.f32.mrb[0].mxu0
        %v1093 = vadd.f32 0.0, %v1092
        %v1094 = vpop.f32.mrb[0].mxu0
        %v1095 = vpop.f32.mrb[0].mxu0
        %v1096 = vadd.f32 0.0, %v1095
        %v1097 = vpop.f32.mrb[0].mxu0
        %1098 = vdwg.mxu0
        %v1101 = vunpack.c.l.b16 %v1041
        %v1102 = vunpack.c.l.b16 %v1042
        %v1103 = vpack.c.b16 %v1102, %v1101
        %v1105 = vsel %vm1050, %v1103, 0
        %v1108 = vsel %vm1054, %v1035, 0
        %1110 = vmatprep.subr.bf16.mxu0 0
        %1111 = vmatpush1.bf16.msra.mxu0 %v1034
        %1112 = vmatprep.subr.bf16.mxu0 0
        %1113 = vmatpush1.bf16.msra.mxu0 %v1108
        %1114 = vmatprep.subr.bf16.mxu0 0
        %1115 = vmatpush1.bf16.msra.mxu0 0
        %1116 = vmatprep.subr.bf16.mxu0 0
        %1117 = vmatpush1.bf16.msra.mxu0 0
        %1118 = vmatprep.subr.bf16.mxu0 0
        %1119 = vmatpush1.bf16.msra.mxu0 0
        %1120 = vmatprep.subr.bf16.mxu0 0
        %1121 = vmatpush1.bf16.msra.mxu0 0
        %1122 = vmatprep.subr.bf16.mxu0 0
        %1123 = vmatpush1.bf16.msra.mxu0 0
        %1124 = vmatprep.subr.bf16.mxu0 0
        %1125 = vmatpush1.bf16.msra.mxu0 0
        %1126 = vmatprep.subr.bf16.mxu0 0
        %1127 = vmatpush1.bf16.msra.mxu0 0
        %1128 = vmatprep.subr.bf16.mxu0 0
        %1129 = vmatpush1.bf16.msra.mxu0 0
        %1130 = vmatprep.subr.bf16.mxu0 0
        %1131 = vmatpush1.bf16.msra.mxu0 0
        %1132 = vmatprep.subr.bf16.mxu0 0
        %1133 = vmatpush1.bf16.msra.mxu0 0
        %1134 = vmatprep.subr.bf16.mxu0 0
        %1135 = vmatpush1.bf16.msra.mxu0 0
        %1136 = vmatprep.subr.bf16.mxu0 0
        %1137 = vmatpush1.bf16.msra.mxu0 0
        %1138 = vmatprep.subr.bf16.mxu0 0
        %1139 = vmatpush1.bf16.msra.mxu0 0
        %1140 = vmatprep.subr.bf16.mxu0 0
        %1141 = vmatpush1.bf16.msra.mxu0 0
        %1142 = vmatprep.mubr.bf16.mxu0 0
        %1143 = vmatmul.mubr.bf16.gmra.mrb[0].mxu0 %v1105
        %v1144 = vpop.f32.mrb[0].mxu0
        %v1145 = vadd.f32 %v1093, %v1144
        %v1146 = vpop.f32.mrb[0].mxu0
        %v1147 = vpop.f32.mrb[0].mxu0
        %v1148 = vadd.f32 %v1096, %v1147
        %v1149 = vpop.f32.mrb[0].mxu0
        %1150 = vdwg.mxu0
        %s1151 = scalar_lea.vmem %s11, %s31
        %v1152 = vld [vmem:[%s1151] sm:$0x1]
        %v1154 = vlaneseq
        %v1155 = vshrl.u32 %v1154, 7
        %v1156 = vsub.s32 0, %v1155
        %v1157 = vrot.slane %v1152, %v1156
        %v1159 = vadd.f32 %v1145, %v1157
        %v1160 = vadd.f32 %v1148, %v1157
        %v1161 = vmax.f32 %v1159, 0.0
        %v1162 = vmax.f32 %v1160, 0.0
        %1163 = vst [vmem:[#allocation2] sm:$0xff] %v1161
        %1164 = vst [vmem:[#allocation2 + $0x8] sm:$0xff] %v1162
        %p1165 = scmp.eq.s32.totalorder %s31, 2
        // Predicated region
        $region93: #{smpnn_forward.1} parent=87 // pred_check
          %p1166 = pneg %p1165
        $region94: #{smpnn_forward.1} parent=87 // pred_check_branch
          %1168 = sbr.rel (%p1166) target = $region96
        $region95: #{smpnn_forward.1} parent=87 // pred_region
          %v1169 = vld [vmem:[#allocation2] sm:$0xff]
          %v1170 = vld [vmem:[#allocation2 + $0x8] sm:$0xff]
          %v1171 = vpack.c.bf16 %v1170, %v1169
          %v1172 = vld [vmem:[%s13] sm:$0xf]
          %v1173 = vld [vmem:[%s13 + $0x4] sm:$0xf]
          %v1174 = vld [vmem:[%s13 + $0x8] sm:$0xf]
          %v1175 = vld [vmem:[%s13 + $0xc] sm:$0xf]
          %v1176 = vld [vmem:[%s13 + $0x10] sm:$0xf]
          %v1177 = vld [vmem:[%s13 + $0x14] sm:$0xf]
          %v1178 = vld [vmem:[%s13 + $0x18] sm:$0xf]
          %v1179 = vld [vmem:[%s13 + $0x1c] sm:$0xf]
          %v1180 = vld [vmem:[%s13 + $0x20] sm:$0xf]
          %v1181 = vld [vmem:[%s13 + $0x24] sm:$0xf]
          %v1182 = vld [vmem:[%s13 + $0x28] sm:$0xf]
          %v1183 = vld [vmem:[%s13 + $0x2c] sm:$0xf]
          %v1184 = vld [vmem:[%s13 + $0x30] sm:$0xf]
          %v1185 = vld [vmem:[%s13 + $0x34] sm:$0xf]
          %v1186 = vld [vmem:[%s13 + $0x38] sm:$0xf]
          %v1187 = vld [vmem:[%s13 + $0x3c] sm:$0xf]
          %v1188 = vld [vmem:[%s14] sm:$0x1]
          %v1190 = vlaneseq
          %v1191 = vshrl.u32 %v1190, 7
          %v1192 = vsub.s32 0, %v1191
          %v1193 = vrot.slane %v1188, %v1192
          %v1211 = vunpack.c.l.b16 %v1172
          %v1212 = vunpack.c.l.b16 %v1173
          %v1213 = vunpack.c.l.b16 %v1174
          %v1214 = vunpack.c.l.b16 %v1175
          %v1215 = vunpack.c.l.b16 %v1176
          %v1216 = vunpack.c.l.b16 %v1177
          %v1217 = vunpack.c.l.b16 %v1178
          %v1218 = vunpack.c.l.b16 %v1179
          %v1219 = vunpack.c.l.b16 %v1180
          %v1220 = vunpack.c.l.b16 %v1181
          %v1221 = vunpack.c.l.b16 %v1182
          %v1222 = vunpack.c.l.b16 %v1183
          %v1223 = vunpack.c.l.b16 %v1184
          %v1224 = vunpack.c.l.b16 %v1185
          %v1225 = vunpack.c.l.b16 %v1186
          %v1226 = vunpack.c.l.b16 %v1187
          %v1227 = vpack.c.b16 %v1212, %v1211
          %v1228 = vpack.c.b16 %v1214, %v1213
          %v1229 = vpack.c.b16 %v1216, %v1215
          %v1230 = vpack.c.b16 %v1218, %v1217
          %v1231 = vpack.c.b16 %v1220, %v1219
          %v1232 = vpack.c.b16 %v1222, %v1221
          %v1233 = vpack.c.b16 %v1224, %v1223
          %v1234 = vpack.c.b16 %v1226, %v1225
          %1243 = vmatprep.subr.bf16.mxu0 0
          %1244 = vmatpush1.bf16.msra.mxu0 %v1227
          %1245 = vmatprep.subr.bf16.mxu0 0
          %1246 = vmatpush1.bf16.msra.mxu0 %v1228
          %1247 = vmatprep.subr.bf16.mxu0 0
          %1248 = vmatpush1.bf16.msra.mxu0 %v1229
          %1249 = vmatprep.subr.bf16.mxu0 0
          %1250 = vmatpush1.bf16.msra.mxu0 %v1230
          %1251 = vmatprep.subr.bf16.mxu0 0
          %1252 = vmatpush1.bf16.msra.mxu0 %v1231
          %1253 = vmatprep.subr.bf16.mxu0 0
          %1254 = vmatpush1.bf16.msra.mxu0 %v1232
          %1255 = vmatprep.subr.bf16.mxu0 0
          %1256 = vmatpush1.bf16.msra.mxu0 %v1233
          %1257 = vmatprep.subr.bf16.mxu0 0
          %1258 = vmatpush1.bf16.msra.mxu0 %v1234
          %1259 = vmatprep.subr.bf16.mxu0 0
          %1260 = vmatpush1.bf16.msra.mxu0 0
          %1261 = vmatprep.subr.bf16.mxu0 0
          %1262 = vmatpush1.bf16.msra.mxu0 0
          %1263 = vmatprep.subr.bf16.mxu0 0
          %1264 = vmatpush1.bf16.msra.mxu0 0
          %1265 = vmatprep.subr.bf16.mxu0 0
          %1266 = vmatpush1.bf16.msra.mxu0 0
          %1267 = vmatprep.subr.bf16.mxu0 0
          %1268 = vmatpush1.bf16.msra.mxu0 0
          %1269 = vmatprep.subr.bf16.mxu0 0
          %1270 = vmatpush1.bf16.msra.mxu0 0
          %1271 = vmatprep.subr.bf16.mxu0 0
          %1272 = vmatpush1.bf16.msra.mxu0 0
          %1273 = vmatprep.subr.bf16.mxu0 0
          %1274 = vmatpush1.bf16.msra.mxu0 0
          %1275 = vmatprep.mubr.bf16.mxu0 0
          %1276 = vmatmul.mubr.bf16.gmra.mrb[0].mxu0 %v1171
          %v1277 = vpop.f32.mrb[0].mxu0
          %v1278 = vadd.f32 %v1193, %v1277
          %v1279 = vpop.f32.mrb[0].mxu0
          %v1280 = vpop.f32.mrb[0].mxu0
          %v1281 = vadd.f32 %v1193, %v1280
          %v1282 = vpop.f32.mrb[0].mxu0
          %1283 = vdwg.mxu0
          %v1284 = vmax.f32 %v1278, 0.0
          %v1285 = vmax.f32 %v1281, 0.0
          %v1286 = vand.u32 2147483647, %v1278
          %v1287 = vand.u32 2147483647, %v1281
          %v1288 = vsub.f32 0.0, %v1286
          %v1289 = vsub.f32 0.0, %v1287
          %v1290 = vmul.f32 %v1288, 1.442695
          %v1291 = vpow.pop %v1290
          %v1292 = vmul.f32 %v1289, 1.442695
          %v1293 = vpow.pop %v1292
          %v1294 = vadd.f32 %v1291, 1.0
          %v1295 = vadd.f32 %v1293, 1.0
          %v1296 = vlog2.pop %v1294
          %v1297 = vmul.f32 %v1296, 0.6931472
          %v1298 = vlog2.pop %v1295
          %v1299 = vmul.f32 %v1298, 0.6931472
          %v1300 = vadd.f32 %v1284, %v1297
          %v1301 = vadd.f32 %v1285, %v1299
          %v1302 = vsub.f32 %v1300, 0.6931472
          %v1303 = vsub.f32 %v1301, 0.6931472
          %v1304 = vld [vmem:[%s15] sm:$0x1]
          %v1306 = vlaneseq
          %v1307 = vshrl.u32 %v1306, 7
          %v1308 = vsub.s32 0, %v1307
          %v1309 = vrot.slane %v1304, %v1308
          %v1311 = vmul.f32 %v1302, %v1309
          %v1312 = vmul.f32 %v1303, %v1309
          %vm1313 = vcmask 523264
          %v1314 = vsel %vm1313, %v1311, 0.0
          %1315 = vadd.xlane.f32.xlu0 %v1314
          %v1316 = vpop.xlane.xlu0 %1315
          %v1317 = vsel %vm1313, %v1312, 0.0
          %1318 = vadd.xlane.f32.xlu0 %v1317
          %v1319 = vpop.xlane.xlu0 %1318
          %v1320 = vld [vmem:[#allocation3] sm:$0x1]
          %v1322 = vlaneseq
          %v1323 = vshrl.u32 %v1322, 7
          %v1324 = vsub.s32 0, %v1323
          %v1325 = vrot.slane %v1320, %v1324
          %v1327 = vadd.f32 %v1316, %v1325
          %v1328 = vadd.f32 %v1319, %v1325
          %v1329 = vlaneseq
          %v1330 = vand.u32 %v1329, 127
          %v1331 = vld [vmem:[%s12] sm:$0xff]
          %v1332 = vld [vmem:[%s12 + $0x8] sm:$0xff]
          %1333 = vset.pattern.permute.xlu0 0
          %1334 = vperm.xlu0 %1333, %v1331
          %v1335 = vpop.permute.xlu0 %1334
          %1336 = vset.pattern.permute.xlu0 0
          %1337 = vperm.xlu0 %1336, %v1332
          %v1338 = vpop.permute.xlu0 %1337
          %vm1339 = vcmp.eq.s32.totalorder %v1335, %v1330
          %vm1340 = vcmp.eq.s32.totalorder %v1338, %v1330
          %1342 = vset.pattern.permute.xlu0 0
          %1343 = vperm.xlu0 %1342, %v1327
          %v1344 = vpop.permute.xlu0 %1343
          %1347 = vset.pattern.permute.xlu0 0
          %1348 = vperm.xlu0 %1347, %v1328
          %v1349 = vpop.permute.xlu0 %1348
          %v1351 = vsel %vm1339, %v1344, 0.0
          %v1352 = vsel %vm1340, %v1349, 0.0
          %vm1353 = vcmask 15360
          %v1354 = vsel %vm1353, %v1351, 0.0
          %v1355 = vsel %vm1353, %v1352, 0.0
          %v1356 = vadd.f32 %v1354, %v1355
          %v1357 = vrot.slane %v1356, 4
          %v1358 = vadd.f32 %v1356, %v1357
          %v1359 = vrot.slane %v1358, 2
          %v1360 = vadd.f32 %v1358, %v1359
          %v1361 = vrot.slane %v1360, 1
          %v1362 = vadd.f32 %v1360, %v1361
          %vm1363 = vcmask 8192
          %1364 = vst.msk [vmem:[#allocation4] sm:$0x1] %vm1363, %v1362
        $region96: #{smpnn_forward.1} parent=87 // pred_fallthru
          _
        // Predicated region
        $region97: #{smpnn_forward.1} parent=87 // pred_check
          %p1365 = pneg %p401
        $region98: #{smpnn_forward.1} parent=87 // pred_check_branch
          %1367 = sbr.rel (%p1365) target = $region100
        $region99: #{smpnn_forward.1} parent=87 // pred_region
          %s1369 = ssub.s32 16, 16
          %1370 = vsyncadd [#allocation5], %s1369
          %s1372 = sshll.u32 [#allocation4], 4
          %s1373 = int_to_ptr.vmem [resolvable:$true] %s1372
          %1375 = dma.vmem_to_hbm [thread:$0]  %s1373, 16, %s17, [#allocation5]
        $region100: #{smpnn_forward.1} parent=87 // pred_fallthru
          _
        // Predicated region
        $region101: #{smpnn_forward.1} parent=87 // pred_check
          %p1376 = pneg %p401
        $region102: #{smpnn_forward.1} parent=87 // pred_check_branch
          %1378 = sbr.rel (%p1376) target = $region104
        $region103: #{smpnn_forward.1} parent=87 // pred_region
          %1379 = dma.done [#allocation5], 16
        $region104: #{smpnn_forward.1} parent=87 // pred_fallthru
          _
      $region88: #{smpnn_forward.1} parent=5 // pred_fallthru
        _
      %p1380 = scmp.le.s32.totalorder 2, %s26
      // Predicated region
      $region105: #{smpnn_forward.1} parent=5 // pred_check
        %p1381 = pneg %p1380
      $region106: #{smpnn_forward.1} parent=5 // pred_check_branch
        %1383 = sbr.rel (%p1381) target = $region108
      $region107: #{smpnn_forward.1} parent=5 // pred_region
        %s1384 = ssub.s32 %s26, 2
      $region108: #{smpnn_forward.1} parent=5 // pred_fallthru
        _
    $region6: #{smpnn_forward.1} parent=1 // loop_footer
      %s30 = sadd.s32 1, %s26
    $region7: #{smpnn_forward.1} parent=1 // loop_footer_branch
      %25 = sbr.rel target = $region3
    $region8: #{smpnn_forward.1} parent=1 // loop_exit
      _
    %1385 = vsyncpa [#allocation5], 1
    %s1386 = scalar_lea.sflag [#allocation5], 1
    %1387 = vsyncpa %s1386, 1

</llo_original>
